<compile_context>
chip_gen: v7x
topology: tpu7x:2x2x1
jax: 0.10.0
libtpu: 0.0.40
codegen_flags: <defaults>
</compile_context>

<pallas_src>
import jax
import jax.numpy as jnp
import numpy as np
from jax.experimental import pallas as pl
from jax.experimental.pallas import tpu as pltpu


# --------------------------- kernel -----------------------------------------
def _make_refinement_kernel(lambda_softmax, matmul_dtype):
    lam = float(lambda_softmax)
    mm = matmul_dtype
    approx_recip = (jnp.dtype(matmul_dtype) != jnp.dtype(jnp.float32))

    def kernel(cap_lens_ref,            # scalar prefetch (SMEM): (n_caption,)
               q_ref,                   # (TB, Q, D)  image tile (input dtype)
               c_ref,                   # (S, D)      caption words   (mm dtype)
               ct_ref,                  # (D, S)      caption words^T (mm dtype)
               wss_ref, bss_ref,        # fused [fc_scale|fc_shift]: (D,2D) mm, (1,2D) f32
               w1_ref, b1_ref,          # fc_1: (D,D) mm, (1,D) f32
               w2_ref, b2_ref,          # fc_2: (D,D) mm, (1,D) f32
               o_ref):                  # (TB, Q, D)
        i = pl.program_id(0)            # caption index (outer grid axis)
        n_word = cap_lens_ref[i]

        q = q_ref[...]
        TB, Q, D = q.shape
        S = c_ref.shape[0]

        qf = q.reshape(TB * Q, D).astype(jnp.float32)
        q_mm = qf.astype(mm)

        # ---- func_attention --------------------------------------------------
        # attn[(b,q), s] = <q_bq, c_s>: plain (TB*Q, D) @ (D, S) MXU matmul.
        attn = jnp.dot(q_mm, ct_ref[...], preferred_element_type=jnp.float32)
        attn = jnp.where(attn >= 0, attn, 0.1 * attn)            # LeakyReLU(0.1)

        # F.normalize over the QUERY axis per (image, word); fold lambda in.
        attn3 = attn.reshape(TB, Q, S)
        sumsq = jnp.sum(attn3 * attn3, axis=1, keepdims=True)    # (TB, 1, S)
        scale = jax.lax.rsqrt(jnp.maximum(sumsq, 1e-24)) * lam   # == lam / max(||x||,1e-12)
        logits = attn3 * scale

        # softmax over source words, masking out s >= n_word.
        word_mask = jax.lax.broadcasted_iota(jnp.int32, (1, 1, S), 2) < n_word
        logits = jnp.where(word_mask, logits, -1e30)
        m = jnp.max(logits, axis=-1, keepdims=True)
        e = jnp.exp(logits - m)
        denom = jnp.sum(e, axis=-1, keepdims=True)
        p = e * pl.reciprocal(denom, approx=approx_recip)        # (TB, Q, S)

        # weightedContext: (TB*Q, S) @ (S, D).
        wctx = jnp.dot(p.reshape(TB * Q, S).astype(mm), c_ref[...],
                       preferred_element_type=jnp.float32)

        # ---- refine ----------------------------------------------------------
        ss = jnp.dot(wctx.astype(mm), wss_ref[...],
                     preferred_element_type=jnp.float32) + bss_ref[...]
        scaling = jnp.tanh(ss[:, :D])
        shifting = ss[:, D:]
        h = qf * scaling + shifting
        h = jnp.maximum(
            jnp.dot(h.astype(mm), w1_ref[...],
                    preferred_element_type=jnp.float32) + b1_ref[...], 0.0)
        modu = jnp.dot(h.astype(mm), w2_ref[...],
                       preferred_element_type=jnp.float32) + b2_ref[...]
        out = modu + qf
        o_ref[...] = out.reshape(TB, Q, D).astype(o_ref.dtype)

    return kernel


# --------------------------- wrapper -----------------------------------------
def _pad_axis(x, axis, mult):
    pad = (-x.shape[axis]) % mult
    if pad == 0:
        return x
    widths = [(0, 0)] * x.ndim
    widths[axis] = (0, pad)
    return jnp.pad(x, widths)


def _pick_image_tile(n_image, q_rows, target_rows=512):
    """Largest divisor of n_image with TB*q_rows <= target_rows (>= 1)."""
    best = 1
    for t in range(1, n_image + 1):
        if n_image % t == 0 and t * q_rows <= target_rows:
            best = t
    return best


def _vmem_limit_bytes():
    try:
        cap = pltpu.get_tpu_info().vmem_capacity_bytes
        # Leave headroom for compiler scratch: 48 MiB-class on v7x, 96 MiB on v5e/v6e.
        return min(int(cap * 3 // 4), 96 * 1024 * 1024)
    except Exception:
        return 48 * 1024 * 1024  # conservative fallback, fits every generation


def refinement_forward(rgn, wrd, cap_lens, params, lambda_softmax,
                       matmul_dtype=jnp.float32):
    """rgn: (n_image, Q, D); wrd: (n_caption, S, D); cap_lens: int (n_caption,).

    Returns ref_emb of shape (n_image, n_caption, Q, D), matching
    Refinement.forward_ref of the PyTorch module.
    NOTE: cap_lens entries are assumed >= 1 (same assumption as the module).
    """
    # TODO(synk): the rgn.dim()==4 branch of forward_ref (per-caption regions)
    # is not implemented; only the shared-region (3D rgn) path is.
    n_image, Q, D = rgn.shape
    n_caption, S, _ = wrd.shape

    # Pad to tile-friendly sizes: Q -> multiple of 8, D/S -> multiple of 128.
    rgn_p = _pad_axis(_pad_axis(rgn, 1, 8), 2, 128)
    wrd_p = _pad_axis(_pad_axis(wrd, 1, 128), 2, 128)
    Qp, Dp = rgn_p.shape[1], rgn_p.shape[2]
    Sp = wrd_p.shape[1]

    mm = matmul_dtype

    def pad_w(w):   # torch (out,in) -> transposed + zero-padded (Dp, Dp)
        return jnp.pad(w.T, ((0, Dp - D), (0, Dp - D)))

    def pad_b(b):   # (D,) -> (Dp,)
        return jnp.pad(b, (0, Dp - D))

    wss = jnp.concatenate([pad_w(params["fc_scale_w"]),
                           pad_w(params["fc_shift_w"])], axis=1).astype(mm)
    bss = jnp.concatenate([pad_b(params["fc_scale_b"]),
                           pad_b(params["fc_shift_b"])]).reshape(1, 2 * Dp)
    w1t = pad_w(params["fc_1_w"]).astype(mm)
    w2t = pad_w(params["fc_2_w"]).astype(mm)
    b1 = pad_b(params["fc_1_b"]).reshape(1, Dp)
    b2 = pad_b(params["fc_2_b"]).reshape(1, Dp)

    wrd_mm = wrd_p.astype(mm)
    wrd_t_mm = jnp.swapaxes(wrd_mm, 1, 2)            # (n_caption, Dp, Sp)

    TB = _pick_image_tile(n_image, Qp)
    n_tiles = n_image // TB

    kernel = _make_refinement_kernel(lambda_softmax, mm)

    def build(single_buffer_resident):
        def const_spec(shape):
            kwargs = {}
            if single_buffer_resident:
                # Constant index_map -> fetched once; single buffer halves VMEM.
                kwargs["pipeline_mode"] = pl.Buffered(1)
            return pl.BlockSpec(shape, lambda i, b, cl: (0,) * len(shape), **kwargs)

        grid_spec = pltpu.PrefetchScalarGridSpec(
            num_scalar_prefetch=1,
            grid=(n_caption, n_tiles),                                 # caption outermost
            in_specs=[
                pl.BlockSpec((TB, Qp, Dp), lambda i, b, cl: (b, 0, 0)),    # rgn tile
                pl.BlockSpec((None, Sp, Dp), lambda i, b, cl: (i, 0, 0)),  # wrd (S,D)
                pl.BlockSpec((None, Dp, Sp), lambda i, b, cl: (i, 0, 0)),  # wrd^T (D,S)
                const_spec((Dp, 2 * Dp)),                                  # fused scale/shift W
                const_spec((1, 2 * Dp)),                                   # fused scale/shift b
                const_spec((Dp, Dp)),                                      # fc_1 W^T
                const_spec((1, Dp)),                                       # fc_1 b
                const_spec((Dp, Dp)),                                      # fc_2 W^T
                const_spec((1, Dp)),                                       # fc_2 b
            ],
            # Output emitted directly in (n_image, n_caption, Q, D) layout.
            out_specs=pl.BlockSpec((TB, None, Qp, Dp),
                                   lambda i, b, cl: (b, i, 0, 0)),
        )
        return pl.pallas_call(
            kernel,
            out_shape=jax.ShapeDtypeStruct((n_image, n_caption, Qp, Dp), rgn.dtype),
            grid_spec=grid_spec,
            compiler_params=pltpu.CompilerParams(
                dimension_semantics=("parallel", "parallel"),
                vmem_limit_bytes=_vmem_limit_bytes()),
        )

    args = (jnp.asarray(cap_lens, dtype=jnp.int32), rgn_p, wrd_mm, wrd_t_mm,
            wss, bss, w1t, b1, w2t, b2)
    try:
        out = build(True)(*args)
    except Exception:
        # pipeline_mode=pl.Buffered(1) not supported on this jax version; the
        # default 2-deep pipeline is functionally identical.
        out = build(False)(*args)

    return out[:, :, :Q, :D]


# ---------------- pure-JAX reference (mirrors the PyTorch module) ------------
def _linear(x, w, b):
    return x @ w.T + b


def reference_forward(rgn, wrd, cap_lens_list, params, lam):
    n_image = rgn.shape[0]
    outs = []
    for i, n_word in enumerate(cap_lens_list):
        query = rgn                                        # (B, Q, D)
        cap_i = wrd[i, :n_word, :][None]                   # (1, S_i, D)
        ctx = jnp.repeat(cap_i, n_image, axis=0)           # (B, S_i, D)
        attn = jnp.einsum('bsd,bqd->bsq', ctx, query)
        attn = jnp.where(attn >= 0, attn, 0.1 * attn)
        norm = jnp.sqrt(jnp.sum(attn * attn, axis=2, keepdims=True))
        attn = attn / jnp.maximum(norm, 1e-12)
        attn = jnp.transpose(attn, (0, 2, 1)) * lam        # (B, Q, S_i)
        attn = jax.nn.softmax(attn, axis=-1)
        wctx = jnp.einsum('bqs,bsd->bqd', attn, ctx)       # (B, Q, D)
        scaling = jnp.tanh(_linear(wctx, params["fc_scale_w"], params["fc_scale_b"]))
        shifting = _linear(wctx, params["fc_shift_w"], params["fc_shift_b"])
        h = jax.nn.relu(_linear(query * scaling + shifting,
                                params["fc_1_w"], params["fc_1_b"]))
        modu = _linear(h, params["fc_2_w"], params["fc_2_b"])
        outs.append((modu + query)[:, None])
    return jnp.concatenate(outs, axis=1)


if __name__ == "__main__":
    n_image, n_caption = 2, 3
    queryL, max_words, embed = 16, 8, 32
    lambda_softmax = 4.0

    key = jax.random.PRNGKey(0)
    ks = jax.random.split(key, 10)
    rgn = jax.random.normal(ks[0], (n_image, queryL, embed), jnp.float32)
    wrd = jax.random.normal(ks[1], (n_caption, max_words, embed), jnp.float32)
    cap_lens_list = [8, 5, 7]      # NOTE: n_word >= 1 assumed (as in the PyTorch module)
    cap_lens = jnp.asarray(cap_lens_list, dtype=jnp.int32)

    params = {
        "fc_scale_w": 0.1 * jax.random.normal(ks[2], (embed, embed), jnp.float32),
        "fc_scale_b": 0.01 * jax.random.normal(ks[3], (embed,), jnp.float32),
        "fc_shift_w": 0.1 * jax.random.normal(ks[4], (embed, embed), jnp.float32),
        "fc_shift_b": 0.01 * jax.random.normal(ks[5], (embed,), jnp.float32),
        "fc_1_w": 0.1 * jax.random.normal(ks[6], (embed, embed), jnp.float32),
        "fc_1_b": 0.01 * jax.random.normal(ks[7], (embed,), jnp.float32),
        "fc_2_w": 0.1 * jax.random.normal(ks[8], (embed, embed), jnp.float32),
        "fc_2_b": 0.01 * jax.random.normal(ks[9], (embed,), jnp.float32),
    }

    ref = reference_forward(rgn, wrd, cap_lens_list, params, lambda_softmax)

    # f32 matmul path: faithful to the module's numerics.
    out_f32 = jax.block_until_ready(
        refinement_forward(rgn, wrd, cap_lens, params, lambda_softmax,
                           matmul_dtype=jnp.float32))
    np.testing.assert_allclose(np.asarray(out_f32), np.asarray(ref),
                               rtol=1e-4, atol=1e-4)
    assert out_f32.shape == (n_image, n_caption, queryL, embed)

    # bf16 MXU path (f32 accumulation): higher throughput, looser tolerance.
    out_bf16 = jax.block_until_ready(
        refinement_forward(rgn, wrd, cap_lens, params, lambda_softmax,
                           matmul_dtype=jnp.bfloat16))
    np.testing.assert_allclose(np.asarray(out_bf16), np.asarray(ref),
                               rtol=6e-2, atol=6e-2)

    print("KERNEL_OK")
</pallas_src>

<mosaic_0001>
module attributes {stable_mosaic.version = 11 : i64} {
  func.func @kernel(%arg0: i32, %arg1: i32, %arg2: memref<3xi32, #tpu.memory_space<smem>>, %arg3: memref<2x16x128xf32, #tpu.memory_space<vmem>>, %arg4: memref<1x128x128xf32, #tpu.memory_space<vmem>>, %arg5: memref<1x128x128xf32, #tpu.memory_space<vmem>>, %arg6: memref<128x256xf32, #tpu.memory_space<vmem>>, %arg7: memref<1x256xf32, #tpu.memory_space<vmem>>, %arg8: memref<128x128xf32, #tpu.memory_space<vmem>>, %arg9: memref<1x128xf32, #tpu.memory_space<vmem>>, %arg10: memref<128x128xf32, #tpu.memory_space<vmem>>, %arg11: memref<1x128xf32, #tpu.memory_space<vmem>>, %arg12: memref<2x1x16x128xf32, #tpu.memory_space<vmem>>) attributes {dimension_semantics = [#tpu.dimension_semantics<parallel>, #tpu.dimension_semantics<parallel>], iteration_bounds = array<i64: 3, 1>, scalar_prefetch = 1 : i64, scratch_operands = 0 : i64, tpu.core_type = #tpu.core_type<tc>, window_params = [{transform_indices = @transform_0, window_bounds = array<i64: 2, 16, 128>}, {transform_indices = @transform_1, window_bounds = array<i64: 1, 128, 128>}, {transform_indices = @transform_2, window_bounds = array<i64: 1, 128, 128>}, {pipeline_mode = #tpu.pipeline_mode<synchronous>, transform_indices = @transform_3, window_bounds = array<i64: 128, 256>}, {pipeline_mode = #tpu.pipeline_mode<synchronous>, transform_indices = @transform_4, window_bounds = array<i64: 1, 256>}, {pipeline_mode = #tpu.pipeline_mode<synchronous>, transform_indices = @transform_5, window_bounds = array<i64: 128, 128>}, {pipeline_mode = #tpu.pipeline_mode<synchronous>, transform_indices = @transform_6, window_bounds = array<i64: 1, 128>}, {pipeline_mode = #tpu.pipeline_mode<synchronous>, transform_indices = @transform_7, window_bounds = array<i64: 128, 128>}, {pipeline_mode = #tpu.pipeline_mode<synchronous>, transform_indices = @transform_8, window_bounds = array<i64: 1, 128>}, {transform_indices = @transform_9, window_bounds = array<i64: 2, 1, 16, 128>}]} {
    %0 = arith.index_cast %arg0 : i32 to index
    %1 = memref.load %arg2[%0] : memref<3xi32, #tpu.memory_space<smem>>
    %c0 = arith.constant 0 : index
    %c0_0 = arith.constant 0 : index
    %c0_1 = arith.constant 0 : index
    %2 = vector.load %arg3[%c0, %c0_0, %c0_1] : memref<2x16x128xf32, #tpu.memory_space<vmem>>, vector<2x16x128xf32>
    %3 = vector.shape_cast %2 : vector<2x16x128xf32> to vector<32x128xf32>
    %c0_2 = arith.constant 0 : index
    %c0_3 = arith.constant 0 : index
    %c0_4 = arith.constant 0 : index
    %4 = vector.load %arg5[%c0_2, %c0_3, %c0_4] : memref<1x128x128xf32, #tpu.memory_space<vmem>>, vector<1x128x128xf32>
    %5 = vector.shape_cast %4 : vector<1x128x128xf32> to vector<128x128xf32>
    %cst = arith.constant dense<0.000000e+00> : vector<32x128xf32>
    %6 = tpu.matmul %3, %5, %cst {dimension_numbers = #tpu.dot_dimension_numbers<[1], [0], [0], [1], [0, 0, 1, 1], [], []>} : vector<32x128xf32>, vector<128x128xf32>, vector<32x128xf32> -> vector<32x128xf32>
    %cst_5 = arith.constant 0.000000e+00 : f32
    %7 = vector.broadcast %cst_5 : f32 to vector<32x128xf32>
    %8 = arith.cmpf oge, %6, %7 : vector<32x128xf32>
    %cst_6 = arith.constant 1.000000e-01 : f32
    %9 = vector.broadcast %cst_6 : f32 to vector<32x128xf32>
    %10 = arith.mulf %9, %6 : vector<32x128xf32>
    %11 = arith.select %8, %6, %10 : vector<32x128xi1>, vector<32x128xf32>
    %12 = vector.shape_cast %11 : vector<32x128xf32> to vector<2x16x128xf32>
    %13 = arith.mulf %12, %12 : vector<2x16x128xf32>
    %cst_7 = arith.constant dense<0.000000e+00> : vector<2x128xf32>
    %14 = vector.multi_reduction <add>, %13, %cst_7 [1] : vector<2x16x128xf32> to vector<2x128xf32>
    %15 = vector.shape_cast %14 : vector<2x128xf32> to vector<2x1x128xf32>
    %cst_8 = arith.constant 1.000000e-24 : f32
    %16 = vector.broadcast %cst_8 : f32 to vector<2x1x128xf32>
    %17 = arith.maximumf %15, %16 : vector<2x1x128xf32>
    %18 = math.rsqrt %17 : vector<2x1x128xf32>
    %cst_9 = arith.constant 4.000000e+00 : f32
    %19 = vector.broadcast %cst_9 : f32 to vector<2x1x128xf32>
    %20 = arith.mulf %18, %19 : vector<2x1x128xf32>
    %21 = vector.broadcast %20 : vector<2x1x128xf32> to vector<2x16x128xf32>
    %22 = arith.mulf %12, %21 : vector<2x16x128xf32>
    %23 = tpu.iota {dimensions = array<i32: 2>} : vector<1x1x128xi32>
    %24 = vector.broadcast %1 : i32 to vector<1x1x128xi32>
    %25 = arith.cmpi slt, %23, %24 : vector<1x1x128xi32>
    %cst_10 = arith.constant -1.000000e+30 : f32
    %26 = vector.shape_cast %25 : vector<1x1x128xi1> to vector<1x1x128xi1>
    %27 = vector.broadcast %26 : vector<1x1x128xi1> to vector<2x16x128xi1>
    %28 = vector.broadcast %cst_10 : f32 to vector<2x16x128xf32>
    %29 = arith.select %27, %22, %28 : vector<2x16x128xi1>, vector<2x16x128xf32>
    %cst_11 = arith.constant dense<0xFF800000> : vector<2x16xf32>
    %30 = vector.multi_reduction <maximumf>, %29, %cst_11 [2] : vector<2x16x128xf32> to vector<2x16xf32>
    %31 = vector.shape_cast %30 : vector<2x16xf32> to vector<2x16x1xf32>
    %32 = vector.broadcast %31 : vector<2x16x1xf32> to vector<2x16x128xf32>
    %33 = arith.subf %29, %32 : vector<2x16x128xf32>
    %34 = math.exp %33 : vector<2x16x128xf32>
    %cst_12 = arith.constant dense<0.000000e+00> : vector<2x16xf32>
    %35 = vector.multi_reduction <add>, %34, %cst_12 [2] : vector<2x16x128xf32> to vector<2x16xf32>
    %36 = vector.shape_cast %35 : vector<2x16xf32> to vector<2x16x1xf32>
    %37 = tpu.reciprocal %36 : vector<2x16x1xf32> -> vector<2x16x1xf32>
    %38 = vector.broadcast %37 : vector<2x16x1xf32> to vector<2x16x128xf32>
    %39 = arith.mulf %34, %38 : vector<2x16x128xf32>
    %40 = vector.shape_cast %39 : vector<2x16x128xf32> to vector<32x128xf32>
    %c0_13 = arith.constant 0 : index
    %c0_14 = arith.constant 0 : index
    %c0_15 = arith.constant 0 : index
    %41 = vector.load %arg4[%c0_13, %c0_14, %c0_15] : memref<1x128x128xf32, #tpu.memory_space<vmem>>, vector<1x128x128xf32>
    %42 = vector.shape_cast %41 : vector<1x128x128xf32> to vector<128x128xf32>
    %cst_16 = arith.constant dense<0.000000e+00> : vector<32x128xf32>
    %43 = tpu.matmul %40, %42, %cst_16 {dimension_numbers = #tpu.dot_dimension_numbers<[1], [0], [0], [1], [0, 0, 1, 1], [], []>} : vector<32x128xf32>, vector<128x128xf32>, vector<32x128xf32> -> vector<32x128xf32>
    %c0_17 = arith.constant 0 : index
    %c0_18 = arith.constant 0 : index
    %44 = vector.load %arg6[%c0_17, %c0_18] : memref<128x256xf32, #tpu.memory_space<vmem>>, vector<128x256xf32>
    %cst_19 = arith.constant dense<0.000000e+00> : vector<32x256xf32>
    %45 = tpu.matmul %43, %44, %cst_19 {dimension_numbers = #tpu.dot_dimension_numbers<[1], [0], [0], [1], [0, 0, 1, 1], [], []>} : vector<32x128xf32>, vector<128x256xf32>, vector<32x256xf32> -> vector<32x256xf32>
    %c0_20 = arith.constant 0 : index
    %c0_21 = arith.constant 0 : index
    %46 = vector.load %arg7[%c0_20, %c0_21] : memref<1x256xf32, #tpu.memory_space<vmem>>, vector<1x256xf32>
    %47 = vector.broadcast %46 : vector<1x256xf32> to vector<32x256xf32>
    %48 = arith.addf %45, %47 : vector<32x256xf32>
    %49 = vector.extract_strided_slice %48 {offsets = [0, 0], sizes = [32, 128], strides = [1, 1]} : vector<32x256xf32> to vector<32x128xf32>
    %50 = math.tanh %49 : vector<32x128xf32>
    %51 = vector.extract_strided_slice %48 {offsets = [0, 128], sizes = [32, 128], strides = [1, 1]} : vector<32x256xf32> to vector<32x128xf32>
    %52 = arith.mulf %3, %50 : vector<32x128xf32>
    %53 = arith.addf %52, %51 : vector<32x128xf32>
    %c0_22 = arith.constant 0 : index
    %c0_23 = arith.constant 0 : index
    %54 = vector.load %arg8[%c0_22, %c0_23] : memref<128x128xf32, #tpu.memory_space<vmem>>, vector<128x128xf32>
    %cst_24 = arith.constant dense<0.000000e+00> : vector<32x128xf32>
    %55 = tpu.matmul %53, %54, %cst_24 {dimension_numbers = #tpu.dot_dimension_numbers<[1], [0], [0], [1], [0, 0, 1, 1], [], []>} : vector<32x128xf32>, vector<128x128xf32>, vector<32x128xf32> -> vector<32x128xf32>
    %c0_25 = arith.constant 0 : index
    %c0_26 = arith.constant 0 : index
    %56 = vector.load %arg9[%c0_25, %c0_26] : memref<1x128xf32, #tpu.memory_space<vmem>>, vector<1x128xf32>
    %57 = vector.broadcast %56 : vector<1x128xf32> to vector<32x128xf32>
    %58 = arith.addf %55, %57 : vector<32x128xf32>
    %cst_27 = arith.constant 0.000000e+00 : f32
    %59 = vector.broadcast %cst_27 : f32 to vector<32x128xf32>
    %60 = arith.maximumf %58, %59 : vector<32x128xf32>
    %c0_28 = arith.constant 0 : index
    %c0_29 = arith.constant 0 : index
    %61 = vector.load %arg10[%c0_28, %c0_29] : memref<128x128xf32, #tpu.memory_space<vmem>>, vector<128x128xf32>
    %cst_30 = arith.constant dense<0.000000e+00> : vector<32x128xf32>
    %62 = tpu.matmul %60, %61, %cst_30 {dimension_numbers = #tpu.dot_dimension_numbers<[1], [0], [0], [1], [0, 0, 1, 1], [], []>} : vector<32x128xf32>, vector<128x128xf32>, vector<32x128xf32> -> vector<32x128xf32>
    %c0_31 = arith.constant 0 : index
    %c0_32 = arith.constant 0 : index
    %63 = vector.load %arg11[%c0_31, %c0_32] : memref<1x128xf32, #tpu.memory_space<vmem>>, vector<1x128xf32>
    %64 = vector.broadcast %63 : vector<1x128xf32> to vector<32x128xf32>
    %65 = arith.addf %62, %64 : vector<32x128xf32>
    %66 = arith.addf %65, %3 : vector<32x128xf32>
    %67 = vector.shape_cast %66 : vector<32x128xf32> to vector<2x16x128xf32>
    %c0_33 = arith.constant 0 : index
    %c0_34 = arith.constant 0 : index
    %c0_35 = arith.constant 0 : index
    %c0_36 = arith.constant 0 : index
    %68 = vector.load %arg12[%c0_33, %c0_34, %c0_35, %c0_36] : memref<2x1x16x128xf32, #tpu.memory_space<vmem>>, vector<2x1x16x128xf32>
    %69 = vector.shape_cast %68 : vector<2x1x16x128xf32> to vector<2x16x128xf32>
    %70 = vector.shape_cast %67 : vector<2x16x128xf32> to vector<2x1x16x128xf32>
    tpu.vector_store %arg12[%c0_33, %c0_34, %c0_35, %c0_36], %70 {strides = array<i32>} : memref<2x1x16x128xf32, #tpu.memory_space<vmem>>, vector<2x1x16x128xf32>,
    return
  }
  func.func @transform_0(%arg0: i32, %arg1: i32, %arg2: memref<3xi32, #tpu.memory_space<smem>>) -> (i32, i32, i32) {
    %c0_i32 = arith.constant 0 : i32
    %c0_i32_0 = arith.constant 0 : i32
    %c0_i32_1 = arith.constant 0 : i32
    return %arg1, %c0_i32, %c0_i32_0 : i32, i32, i32
  }
  func.func @transform_1(%arg0: i32, %arg1: i32, %arg2: memref<3xi32, #tpu.memory_space<smem>>) -> (i32, i32, i32) {
    %c0_i32 = arith.constant 0 : i32
    %c0_i32_0 = arith.constant 0 : i32
    %c0_i32_1 = arith.constant 0 : i32
    return %arg0, %c0_i32, %c0_i32_0 : i32, i32, i32
  }
  func.func @transform_2(%arg0: i32, %arg1: i32, %arg2: memref<3xi32, #tpu.memory_space<smem>>) -> (i32, i32, i32) {
    %c0_i32 = arith.constant 0 : i32
    %c0_i32_0 = arith.constant 0 : i32
    %c0_i32_1 = arith.constant 0 : i32
    return %arg0, %c0_i32, %c0_i32_0 : i32, i32, i32
  }
  func.func @transform_3(%arg0: i32, %arg1: i32, %arg2: memref<3xi32, #tpu.memory_space<smem>>) -> (i32, i32) {
    %c0_i32 = arith.constant 0 : i32
    %c0_i32_0 = arith.constant 0 : i32
    %c0_i32_1 = arith.constant 0 : i32
    return %c0_i32, %c0_i32_0 : i32, i32
  }
  func.func @transform_4(%arg0: i32, %arg1: i32, %arg2: memref<3xi32, #tpu.memory_space<smem>>) -> (i32, i32) {
    %c0_i32 = arith.constant 0 : i32
    %c0_i32_0 = arith.constant 0 : i32
    %c0_i32_1 = arith.constant 0 : i32
    return %c0_i32, %c0_i32_0 : i32, i32
  }
  func.func @transform_5(%arg0: i32, %arg1: i32, %arg2: memref<3xi32, #tpu.memory_space<smem>>) -> (i32, i32) {
    %c0_i32 = arith.constant 0 : i32
    %c0_i32_0 = arith.constant 0 : i32
    %c0_i32_1 = arith.constant 0 : i32
    return %c0_i32, %c0_i32_0 : i32, i32
  }
  func.func @transform_6(%arg0: i32, %arg1: i32, %arg2: memref<3xi32, #tpu.memory_space<smem>>) -> (i32, i32) {
    %c0_i32 = arith.constant 0 : i32
    %c0_i32_0 = arith.constant 0 : i32
    %c0_i32_1 = arith.constant 0 : i32
    return %c0_i32, %c0_i32_0 : i32, i32
  }
  func.func @transform_7(%arg0: i32, %arg1: i32, %arg2: memref<3xi32, #tpu.memory_space<smem>>) -> (i32, i32) {
    %c0_i32 = arith.constant 0 : i32
    %c0_i32_0 = arith.constant 0 : i32
    %c0_i32_1 = arith.constant 0 : i32
    return %c0_i32, %c0_i32_0 : i32, i32
  }
  func.func @transform_8(%arg0: i32, %arg1: i32, %arg2: memref<3xi32, #tpu.memory_space<smem>>) -> (i32, i32) {
    %c0_i32 = arith.constant 0 : i32
    %c0_i32_0 = arith.constant 0 : i32
    %c0_i32_1 = arith.constant 0 : i32
    return %c0_i32, %c0_i32_0 : i32, i32
  }
  func.func @transform_9(%arg0: i32, %arg1: i32, %arg2: memref<3xi32, #tpu.memory_space<smem>>) -> (i32, i32, i32, i32) {
    %c0_i32 = arith.constant 0 : i32
    %c0_i32_0 = arith.constant 0 : i32
    %c0_i32_1 = arith.constant 0 : i32
    return %arg1, %arg0, %c0_i32, %c0_i32_0 : i32, i32, i32, i32
  }
}

module attributes {stable_mosaic.version = 11 : i64} {
  func.func @kernel(%arg0: i32, %arg1: i32, %arg2: memref<3xi32, #tpu.memory_space<smem>>, %arg3: memref<2x16x128xf32, #tpu.memory_space<vmem>>, %arg4: memref<1x128x128xf32, #tpu.memory_space<vmem>>, %arg5: memref<1x128x128xf32, #tpu.memory_space<vmem>>, %arg6: memref<128x256xf32, #tpu.memory_space<vmem>>, %arg7: memref<1x256xf32, #tpu.memory_space<vmem>>, %arg8: memref<128x128xf32, #tpu.memory_space<vmem>>, %arg9: memref<1x128xf32, #tpu.memory_space<vmem>>, %arg10: memref<128x128xf32, #tpu.memory_space<vmem>>, %arg11: memref<1x128xf32, #tpu.memory_space<vmem>>, %arg12: memref<2x1x16x128xf32, #tpu.memory_space<vmem>>) attributes {dimension_semantics = [#tpu.dimension_semantics<parallel>, #tpu.dimension_semantics<parallel>], iteration_bounds = array<i64: 3, 1>, scalar_prefetch = 1 : i64, scratch_operands = 0 : i64, tpu.core_type = #tpu.core_type<tc>, window_params = [{transform_indices = @transform_0, window_bounds = array<i64: 2, 16, 128>}, {transform_indices = @transform_1, window_bounds = array<i64: 1, 128, 128>}, {transform_indices = @transform_2, window_bounds = array<i64: 1, 128, 128>}, {pipeline_mode = #tpu.pipeline_mode<synchronous>, transform_indices = @transform_3, window_bounds = array<i64: 128, 256>}, {pipeline_mode = #tpu.pipeline_mode<synchronous>, transform_indices = @transform_4, window_bounds = array<i64: 1, 256>}, {pipeline_mode = #tpu.pipeline_mode<synchronous>, transform_indices = @transform_5, window_bounds = array<i64: 128, 128>}, {pipeline_mode = #tpu.pipeline_mode<synchronous>, transform_indices = @transform_6, window_bounds = array<i64: 1, 128>}, {pipeline_mode = #tpu.pipeline_mode<synchronous>, transform_indices = @transform_7, window_bounds = array<i64: 128, 128>}, {pipeline_mode = #tpu.pipeline_mode<synchronous>, transform_indices = @transform_8, window_bounds = array<i64: 1, 128>}, {transform_indices = @transform_9, window_bounds = array<i64: 2, 1, 16, 128>}]} {
    %0 = arith.index_cast %arg0 : i32 to index
    %1 = memref.load %arg2[%0] : memref<3xi32, #tpu.memory_space<smem>>
    %c0 = arith.constant 0 : index
    %c0_0 = arith.constant 0 : index
    %c0_1 = arith.constant 0 : index
    %2 = vector.load %arg3[%c0, %c0_0, %c0_1] : memref<2x16x128xf32, #tpu.memory_space<vmem>>, vector<2x16x128xf32>
    %3 = vector.shape_cast %2 : vector<2x16x128xf32> to vector<32x128xf32>
    %c0_2 = arith.constant 0 : index
    %c0_3 = arith.constant 0 : index
    %c0_4 = arith.constant 0 : index
    %4 = vector.load %arg5[%c0_2, %c0_3, %c0_4] : memref<1x128x128xf32, #tpu.memory_space<vmem>>, vector<1x128x128xf32>
    %5 = vector.shape_cast %4 : vector<1x128x128xf32> to vector<128x128xf32>
    %cst = arith.constant dense<0.000000e+00> : vector<32x128xf32>
    %6 = tpu.matmul %3, %5, %cst {dimension_numbers = #tpu.dot_dimension_numbers<[1], [0], [0], [1], [0, 0, 1, 1], [], []>} : vector<32x128xf32>, vector<128x128xf32>, vector<32x128xf32> -> vector<32x128xf32>
    %cst_5 = arith.constant 0.000000e+00 : f32
    %7 = vector.broadcast %cst_5 : f32 to vector<32x128xf32>
    %8 = arith.cmpf oge, %6, %7 : vector<32x128xf32>
    %cst_6 = arith.constant 1.000000e-01 : f32
    %9 = vector.broadcast %cst_6 : f32 to vector<32x128xf32>
    %10 = arith.mulf %9, %6 : vector<32x128xf32>
    %11 = arith.select %8, %6, %10 : vector<32x128xi1>, vector<32x128xf32>
    %12 = vector.shape_cast %11 : vector<32x128xf32> to vector<2x16x128xf32>
    %13 = arith.mulf %12, %12 : vector<2x16x128xf32>
    %cst_7 = arith.constant dense<0.000000e+00> : vector<2x128xf32>
    %14 = vector.multi_reduction <add>, %13, %cst_7 [1] : vector<2x16x128xf32> to vector<2x128xf32>
    %15 = vector.shape_cast %14 : vector<2x128xf32> to vector<2x1x128xf32>
    %cst_8 = arith.constant 1.000000e-24 : f32
    %16 = vector.broadcast %cst_8 : f32 to vector<2x1x128xf32>
    %17 = arith.maximumf %15, %16 : vector<2x1x128xf32>
    %18 = math.rsqrt %17 : vector<2x1x128xf32>
    %cst_9 = arith.constant 4.000000e+00 : f32
    %19 = vector.broadcast %cst_9 : f32 to vector<2x1x128xf32>
    %20 = arith.mulf %18, %19 : vector<2x1x128xf32>
    %21 = vector.broadcast %20 : vector<2x1x128xf32> to vector<2x16x128xf32>
    %22 = arith.mulf %12, %21 : vector<2x16x128xf32>
    %23 = tpu.iota {dimensions = array<i32: 2>} : vector<1x1x128xi32>
    %24 = vector.broadcast %1 : i32 to vector<1x1x128xi32>
    %25 = arith.cmpi slt, %23, %24 : vector<1x1x128xi32>
    %cst_10 = arith.constant -1.000000e+30 : f32
    %26 = vector.shape_cast %25 : vector<1x1x128xi1> to vector<1x1x128xi1>
    %27 = vector.broadcast %26 : vector<1x1x128xi1> to vector<2x16x128xi1>
    %28 = vector.broadcast %cst_10 : f32 to vector<2x16x128xf32>
    %29 = arith.select %27, %22, %28 : vector<2x16x128xi1>, vector<2x16x128xf32>
    %cst_11 = arith.constant dense<0xFF800000> : vector<2x16xf32>
    %30 = vector.multi_reduction <maximumf>, %29, %cst_11 [2] : vector<2x16x128xf32> to vector<2x16xf32>
    %31 = vector.shape_cast %30 : vector<2x16xf32> to vector<2x16x1xf32>
    %32 = vector.broadcast %31 : vector<2x16x1xf32> to vector<2x16x128xf32>
    %33 = arith.subf %29, %32 : vector<2x16x128xf32>
    %34 = math.exp %33 : vector<2x16x128xf32>
    %cst_12 = arith.constant dense<0.000000e+00> : vector<2x16xf32>
    %35 = vector.multi_reduction <add>, %34, %cst_12 [2] : vector<2x16x128xf32> to vector<2x16xf32>
    %36 = vector.shape_cast %35 : vector<2x16xf32> to vector<2x16x1xf32>
    %37 = tpu.reciprocal %36 : vector<2x16x1xf32> -> vector<2x16x1xf32>
    %38 = vector.broadcast %37 : vector<2x16x1xf32> to vector<2x16x128xf32>
    %39 = arith.mulf %34, %38 : vector<2x16x128xf32>
    %40 = vector.shape_cast %39 : vector<2x16x128xf32> to vector<32x128xf32>
    %c0_13 = arith.constant 0 : index
    %c0_14 = arith.constant 0 : index
    %c0_15 = arith.constant 0 : index
    %41 = vector.load %arg4[%c0_13, %c0_14, %c0_15] : memref<1x128x128xf32, #tpu.memory_space<vmem>>, vector<1x128x128xf32>
    %42 = vector.shape_cast %41 : vector<1x128x128xf32> to vector<128x128xf32>
    %cst_16 = arith.constant dense<0.000000e+00> : vector<32x128xf32>
    %43 = tpu.matmul %40, %42, %cst_16 {dimension_numbers = #tpu.dot_dimension_numbers<[1], [0], [0], [1], [0, 0, 1, 1], [], []>} : vector<32x128xf32>, vector<128x128xf32>, vector<32x128xf32> -> vector<32x128xf32>
    %c0_17 = arith.constant 0 : index
    %c0_18 = arith.constant 0 : index
    %44 = vector.load %arg6[%c0_17, %c0_18] : memref<128x256xf32, #tpu.memory_space<vmem>>, vector<128x256xf32>
    %cst_19 = arith.constant dense<0.000000e+00> : vector<32x256xf32>
    %45 = tpu.matmul %43, %44, %cst_19 {dimension_numbers = #tpu.dot_dimension_numbers<[1], [0], [0], [1], [0, 0, 1, 1], [], []>} : vector<32x128xf32>, vector<128x256xf32>, vector<32x256xf32> -> vector<32x256xf32>
    %c0_20 = arith.constant 0 : index
    %c0_21 = arith.constant 0 : index
    %46 = vector.load %arg7[%c0_20, %c0_21] : memref<1x256xf32, #tpu.memory_space<vmem>>, vector<1x256xf32>
    %47 = vector.broadcast %46 : vector<1x256xf32> to vector<32x256xf32>
    %48 = arith.addf %45, %47 : vector<32x256xf32>
    %49 = vector.extract_strided_slice %48 {offsets = [0, 0], sizes = [32, 128], strides = [1, 1]} : vector<32x256xf32> to vector<32x128xf32>
    %50 = math.tanh %49 : vector<32x128xf32>
    %51 = vector.extract_strided_slice %48 {offsets = [0, 128], sizes = [32, 128], strides = [1, 1]} : vector<32x256xf32> to vector<32x128xf32>
    %52 = arith.mulf %3, %50 : vector<32x128xf32>
    %53 = arith.addf %52, %51 : vector<32x128xf32>
    %c0_22 = arith.constant 0 : index
    %c0_23 = arith.constant 0 : index
    %54 = vector.load %arg8[%c0_22, %c0_23] : memref<128x128xf32, #tpu.memory_space<vmem>>, vector<128x128xf32>
    %cst_24 = arith.constant dense<0.000000e+00> : vector<32x128xf32>
    %55 = tpu.matmul %53, %54, %cst_24 {dimension_numbers = #tpu.dot_dimension_numbers<[1], [0], [0], [1], [0, 0, 1, 1], [], []>} : vector<32x128xf32>, vector<128x128xf32>, vector<32x128xf32> -> vector<32x128xf32>
    %c0_25 = arith.constant 0 : index
    %c0_26 = arith.constant 0 : index
    %56 = vector.load %arg9[%c0_25, %c0_26] : memref<1x128xf32, #tpu.memory_space<vmem>>, vector<1x128xf32>
    %57 = vector.broadcast %56 : vector<1x128xf32> to vector<32x128xf32>
    %58 = arith.addf %55, %57 : vector<32x128xf32>
    %cst_27 = arith.constant 0.000000e+00 : f32
    %59 = vector.broadcast %cst_27 : f32 to vector<32x128xf32>
    %60 = arith.maximumf %58, %59 : vector<32x128xf32>
    %c0_28 = arith.constant 0 : index
    %c0_29 = arith.constant 0 : index
    %61 = vector.load %arg10[%c0_28, %c0_29] : memref<128x128xf32, #tpu.memory_space<vmem>>, vector<128x128xf32>
    %cst_30 = arith.constant dense<0.000000e+00> : vector<32x128xf32>
    %62 = tpu.matmul %60, %61, %cst_30 {dimension_numbers = #tpu.dot_dimension_numbers<[1], [0], [0], [1], [0, 0, 1, 1], [], []>} : vector<32x128xf32>, vector<128x128xf32>, vector<32x128xf32> -> vector<32x128xf32>
    %c0_31 = arith.constant 0 : index
    %c0_32 = arith.constant 0 : index
    %63 = vector.load %arg11[%c0_31, %c0_32] : memref<1x128xf32, #tpu.memory_space<vmem>>, vector<1x128xf32>
    %64 = vector.broadcast %63 : vector<1x128xf32> to vector<32x128xf32>
    %65 = arith.addf %62, %64 : vector<32x128xf32>
    %66 = arith.addf %65, %3 : vector<32x128xf32>
    %67 = vector.shape_cast %66 : vector<32x128xf32> to vector<2x16x128xf32>
    %c0_33 = arith.constant 0 : index
    %c0_34 = arith.constant 0 : index
    %c0_35 = arith.constant 0 : index
    %c0_36 = arith.constant 0 : index
    %68 = vector.load %arg12[%c0_33, %c0_34, %c0_35, %c0_36] : memref<2x1x16x128xf32, #tpu.memory_space<vmem>>, vector<2x1x16x128xf32>
    %69 = vector.shape_cast %68 : vector<2x1x16x128xf32> to vector<2x16x128xf32>
    %70 = vector.shape_cast %67 : vector<2x16x128xf32> to vector<2x1x16x128xf32>
    tpu.vector_store %arg12[%c0_33, %c0_34, %c0_35, %c0_36], %70 {strides = array<i32>} : memref<2x1x16x128xf32, #tpu.memory_space<vmem>>, vector<2x1x16x128xf32>,
    return
  }
  func.func @transform_0(%arg0: i32, %arg1: i32, %arg2: memref<3xi32, #tpu.memory_space<smem>>) -> (i32, i32, i32) {
    %c0_i32 = arith.constant 0 : i32
    %c0_i32_0 = arith.constant 0 : i32
    %c0_i32_1 = arith.constant 0 : i32
    return %arg1, %c0_i32, %c0_i32_0 : i32, i32, i32
  }
  func.func @transform_1(%arg0: i32, %arg1: i32, %arg2: memref<3xi32, #tpu.memory_space<smem>>) -> (i32, i32, i32) {
    %c0_i32 = arith.constant 0 : i32
    %c0_i32_0 = arith.constant 0 : i32
    %c0_i32_1 = arith.constant 0 : i32
    return %arg0, %c0_i32, %c0_i32_0 : i32, i32, i32
  }
  func.func @transform_2(%arg0: i32, %arg1: i32, %arg2: memref<3xi32, #tpu.memory_space<smem>>) -> (i32, i32, i32) {
    %c0_i32 = arith.constant 0 : i32
    %c0_i32_0 = arith.constant 0 : i32
    %c0_i32_1 = arith.constant 0 : i32
    return %arg0, %c0_i32, %c0_i32_0 : i32, i32, i32
  }
  func.func @transform_3(%arg0: i32, %arg1: i32, %arg2: memref<3xi32, #tpu.memory_space<smem>>) -> (i32, i32) {
    %c0_i32 = arith.constant 0 : i32
    %c0_i32_0 = arith.constant 0 : i32
    %c0_i32_1 = arith.constant 0 : i32
    return %c0_i32, %c0_i32_0 : i32, i32
  }
  func.func @transform_4(%arg0: i32, %arg1: i32, %arg2: memref<3xi32, #tpu.memory_space<smem>>) -> (i32, i32) {
    %c0_i32 = arith.constant 0 : i32
    %c0_i32_0 = arith.constant 0 : i32
    %c0_i32_1 = arith.constant 0 : i32
    return %c0_i32, %c0_i32_0 : i32, i32
  }
  func.func @transform_5(%arg0: i32, %arg1: i32, %arg2: memref<3xi32, #tpu.memory_space<smem>>) -> (i32, i32) {
    %c0_i32 = arith.constant 0 : i32
    %c0_i32_0 = arith.constant 0 : i32
    %c0_i32_1 = arith.constant 0 : i32
    return %c0_i32, %c0_i32_0 : i32, i32
  }
  func.func @transform_6(%arg0: i32, %arg1: i32, %arg2: memref<3xi32, #tpu.memory_space<smem>>) -> (i32, i32) {
    %c0_i32 = arith.constant 0 : i32
    %c0_i32_0 = arith.constant 0 : i32
    %c0_i32_1 = arith.constant 0 : i32
    return %c0_i32, %c0_i32_0 : i32, i32
  }
  func.func @transform_7(%arg0: i32, %arg1: i32, %arg2: memref<3xi32, #tpu.memory_space<smem>>) -> (i32, i32) {
    %c0_i32 = arith.constant 0 : i32
    %c0_i32_0 = arith.constant 0 : i32
    %c0_i32_1 = arith.constant 0 : i32
    return %c0_i32, %c0_i32_0 : i32, i32
  }
  func.func @transform_8(%arg0: i32, %arg1: i32, %arg2: memref<3xi32, #tpu.memory_space<smem>>) -> (i32, i32) {
    %c0_i32 = arith.constant 0 : i32
    %c0_i32_0 = arith.constant 0 : i32
    %c0_i32_1 = arith.constant 0 : i32
    return %c0_i32, %c0_i32_0 : i32, i32
  }
  func.func @transform_9(%arg0: i32, %arg1: i32, %arg2: memref<3xi32, #tpu.memory_space<smem>>) -> (i32, i32, i32, i32) {
    %c0_i32 = arith.constant 0 : i32
    %c0_i32_0 = arith.constant 0 : i32
    %c0_i32_1 = arith.constant 0 : i32
    return %arg1, %arg0, %c0_i32, %c0_i32_0 : i32, i32, i32, i32
  }
}

</mosaic_0001>

<llo_original>
// kernel: tpu_custom_call.1
$region0: #{tpu_custom_call.1}
  #allocation0 [shape = 'u32[]', space=smem, size = 0x4, offset = 0x4, fixed_abs, tag = 'smem constant byte address 0x4 - core index']
  #allocation1 [shape = 'u32[144,128]{1,0:T(1,128)}', space=vmem, size = 0x12000, scoped, tag = 'internal scratch']
  #allocation2 [shape = 's32[1]{0}', space=sflag, size = 0x4, scoped, tag = 'scoped memory for tpu_custom_call.1']
  #allocation3 [shape = 'u8[512]{0}', space=smem, size = 0x200, scoped, tag = 'prefetched SMEM operand 0']
  #allocation16 [shape = 's32[]', space=sflag, size = 0x4, offset = 0, fixed_abs, tag = 'sflag constant byte address 0x0 - dummy sync flag']
  %s0 = inlined_call_operand.hbm [shape: s32[3], index: 0, kind: input, shape index: {}]
  %s1 = inlined_call_operand.hbm [shape: f32[2,16,128], index: 1, kind: input, shape index: {}]
  %s2 = inlined_call_operand.hbm [shape: f32[3,128,128], index: 2, kind: input, shape index: {}]
  %s3 = inlined_call_operand.hbm [shape: f32[3,128,128], index: 3, kind: input, shape index: {}]
  %s4 = inlined_call_operand.hbm [shape: f32[128,256], index: 4, kind: input, shape index: {}]
  %s5 = inlined_call_operand.vmem [shape: f32[1,256], index: 5, kind: input, shape index: {}]
  %s6 = inlined_call_operand.hbm [shape: f32[128,128], index: 6, kind: input, shape index: {}]
  %s7 = inlined_call_operand.vmem [shape: f32[1,128], index: 7, kind: input, shape index: {}]
  %s8 = inlined_call_operand.hbm [shape: f32[128,128], index: 8, kind: input, shape index: {}]
  %s9 = inlined_call_operand.vmem [shape: f32[1,128], index: 9, kind: input, shape index: {}]
  %s10 = inlined_call_operand.hbm [shape: f32[2,3,16,128], index: 10, kind: output, shape index: {}]
  %s11 = sld [smem:[#allocation0]]
  $region93: #{tpu_custom_call.1} parent=0
    _
  %s13 = ssub.s32 1, %s11
  %s14 = scalar_select 0, %s13, %s11
  %16 = dma.hbm_to_smem %s0, 16, [#allocation3], [#allocation2]
  %17 = dma.done [#allocation2], 16
  %18 = sfence
  $region1: #{tpu_custom_call.1} parent=0
    #allocation4 [shape = 'u8[16384]{0}', space=vmem, size = 0x4000, scoped, tag = 'input window, operand 1, single buffered']
    #allocation5 [shape = 's32[2]{0}', space=sflag, size = 0x8, scoped, tag = 'scoped memory for tpu_custom_call.1']
    #allocation6 [shape = 's32[2]{0}', space=sflag, size = 0x8, scoped, tag = 'scoped memory for tpu_custom_call.1']
    #allocation7 [shape = 'u8[131072]{0}', space=vmem, size = 0x20000, scoped, tag = 'input window, operand 2']
    #allocation8 [shape = 's32[2]{0}', space=sflag, size = 0x8, scoped, tag = 'scoped memory for tpu_custom_call.1']
    #allocation9 [shape = 'u8[131072]{0}', space=vmem, size = 0x20000, scoped, tag = 'input window, operand 3']
    #allocation10 [shape = 'u8[131072]{0}', space=vmem, size = 0x20000, scoped, tag = 'input window, operand 4, single buffered']
    #allocation11 [shape = 's32[1]{0}', space=sflag, size = 0x4, scoped, tag = 'scoped memory for tpu_custom_call.1']
    #allocation12 [shape = 'u8[65536]{0}', space=vmem, size = 0x10000, scoped, tag = 'input window, operand 6, single buffered']
    #allocation13 [shape = 'u8[65536]{0}', space=vmem, size = 0x10000, scoped, tag = 'input window, operand 8, single buffered']
    #allocation14 [shape = 's32[1]{0}', space=sflag, size = 0x4, scoped, tag = 'scoped memory for tpu_custom_call.1']
    #allocation15 [shape = 'u8[32768]{0}', space=vmem, size = 0x8000, scoped, tag = 'output window, operand 0']
    %19 = vsyncpa [#allocation5], 0
    %20 = vsyncpa [#allocation8], 0
    %s21 = scalar_lea.sflag [#allocation8], 1
    %22 = vsyncpa %s21, 0
    %23 = vsyncpa [#allocation11], 0
    %24 = vsyncpa [#allocation14], 0
    %25 = vsyncpa [#allocation6], 0
    %s26 = scalar_lea.sflag [#allocation6], 1
    %27 = vsyncpa %s26, 0
    loop: start=0, step=1, limit=5
    $region2: #{tpu_custom_call.1} parent=1 // loop_pre_header
      _
    $region3: #{tpu_custom_call.1} parent=1 // loop_header
      %s29 = sphi 0, %s33
      %p30 = scmp.ge.s32.totalorder %s29, 5
      %s36 = sphi 0, %s48
      %s37 = sphi 0, %s44
      %s38 = sphi 0, %s36
      %s39 = sphi 0, %s37
      %s40 = sphi 0, %s38
      %s41 = sphi 0, %s39
      %s51 = sphi 0, %s53
      %s54 = sphi 0, %s51
      %s55 = sphi 0, %s54
      %s71 = sphi 0, %s55
      %s77 = sphi 0, %s79
      %s80 = sphi 0, %s77
      %s81 = sphi 0, %s80
      %s97 = sphi 0, %s81
      %s103 = sphi 0, %s105
      %s106 = sphi 0, %s103
      %s107 = sphi 0, %s106
      %s123 = sphi 0, %s107
      %s127 = sphi 0, %s127
      %s129 = sphi 0, %s127
      %s130 = sphi 0, %s129
      %s144 = sphi 0, %s130
      %s148 = sphi 0, %s148
      %s150 = sphi 0, %s148
      %s151 = sphi 0, %s150
      %s165 = sphi 0, %s151
      %s169 = sphi 0, %s169
      %s171 = sphi 0, %s169
      %s172 = sphi 0, %s171
      %s186 = sphi 0, %s172
      %s190 = sphi 0, %s190
      %s192 = sphi 0, %s190
      %s193 = sphi 0, %s192
      %s207 = sphi 0, %s193
      %s211 = sphi 0, %s211
      %s213 = sphi 0, %s211
      %s214 = sphi 0, %s213
      %s228 = sphi 0, %s214
      %s232 = sphi 0, %s232
      %s234 = sphi 0, %s232
      %s235 = sphi 0, %s234
      %s249 = sphi 0, %s235
      %s257 = sphi 0, %s259
      %s260 = sphi 0, %s257
      %s261 = sphi 0, %s260
      %s277 = sphi 0, %s261
    $region4: #{tpu_custom_call.1} parent=1 // loop_header_branch
      %32 = sbr.rel (%p30) target = $region8
    $region5: #{tpu_custom_call.1} parent=1 // loop_body
      %s34 = ssub.s32 %s29, 1
      %s35 = ssub.s32 %s29, 2
      %s42 = sadd.s32 1, %s37
      %p43 = scmp.ge.s32.totalorder %s42, 1
      %s44 = scalar_select %p43, 0, %s42
      %s45 = sadd.s32 1, %s36
      %s46 = scalar_select %p43, %s45, %s36
      %p47 = scmp.ge.s32.totalorder %s46, 3
      %s48 = scalar_select %p47, 0, %s46
      %s49 = ssub.s32 %s37, %s44
      %p50 = scmp.eq.s32.totalorder %s49, 0
      %s52 = sadd.s32 %s51, 1
      %s53 = scalar_select %p50, %s51, %s52
      %p56 = pneg %p50
      %p57 = scmp.eq.s32.totalorder %s29, 2
      %p58 = por %p56, %p57
      %p59 = scmp.ne.s32.totalorder %s51, %s54
      %p60 = scmp.eq.s32.totalorder %s29, 0
      %p61 = por %p59, %p60
      %p62 = scmp.ne.s32.totalorder %s51, %s54
      %p63 = scmp.eq.s32.totalorder %s34, 2
      %p64 = por %p62, %p63
      %p65 = scmp.ne.s32.totalorder %s54, %s55
      %p66 = scmp.eq.s32.totalorder %s34, 0
      %p67 = por %p65, %p66
      %p68 = scmp.ne.s32.totalorder %s54, %s55
      %p69 = scmp.eq.s32.totalorder %s35, 2
      %p70 = por %p68, %p69
      %p72 = scmp.ne.s32.totalorder %s55, %s71
      %p73 = scmp.eq.s32.totalorder %s35, 0
      %p74 = por %p72, %p73
      %s75 = ssub.s32 %s36, %s48
      %p76 = scmp.eq.s32.totalorder %s75, 0
      %s78 = sadd.s32 %s77, 1
      %s79 = scalar_select %p76, %s77, %s78
      %p82 = pneg %p76
      %p83 = scmp.eq.s32.totalorder %s29, 2
      %p84 = por %p82, %p83
      %p85 = scmp.ne.s32.totalorder %s77, %s80
      %p86 = scmp.eq.s32.totalorder %s29, 0
      %p87 = por %p85, %p86
      %p88 = scmp.ne.s32.totalorder %s77, %s80
      %p89 = scmp.eq.s32.totalorder %s34, 2
      %p90 = por %p88, %p89
      %p91 = scmp.ne.s32.totalorder %s80, %s81
      %p92 = scmp.eq.s32.totalorder %s34, 0
      %p93 = por %p91, %p92
      %p94 = scmp.ne.s32.totalorder %s80, %s81
      %p95 = scmp.eq.s32.totalorder %s35, 2
      %p96 = por %p94, %p95
      %p98 = scmp.ne.s32.totalorder %s81, %s97
      %p99 = scmp.eq.s32.totalorder %s35, 0
      %p100 = por %p98, %p99
      %s101 = ssub.s32 %s36, %s48
      %p102 = scmp.eq.s32.totalorder %s101, 0
      %s104 = sadd.s32 %s103, 1
      %s105 = scalar_select %p102, %s103, %s104
      %p108 = pneg %p102
      %p109 = scmp.eq.s32.totalorder %s29, 2
      %p110 = por %p108, %p109
      %p111 = scmp.ne.s32.totalorder %s103, %s106
      %p112 = scmp.eq.s32.totalorder %s29, 0
      %p113 = por %p111, %p112
      %p114 = scmp.ne.s32.totalorder %s103, %s106
      %p115 = scmp.eq.s32.totalorder %s34, 2
      %p116 = por %p114, %p115
      %p117 = scmp.ne.s32.totalorder %s106, %s107
      %p118 = scmp.eq.s32.totalorder %s34, 0
      %p119 = por %p117, %p118
      %p120 = scmp.ne.s32.totalorder %s106, %s107
      %p121 = scmp.eq.s32.totalorder %s35, 2
      %p122 = por %p120, %p121
      %p124 = scmp.ne.s32.totalorder %s107, %s123
      %p125 = scmp.eq.s32.totalorder %s35, 0
      %p126 = por %p124, %p125
      %s128 = sadd.s32 %s127, 1
      %p131 = scmp.eq.s32.totalorder %s29, 2
      %p132 = scmp.ne.s32.totalorder %s127, %s129
      %p133 = scmp.eq.s32.totalorder %s29, 0
      %p134 = por %p132, %p133
      %p135 = scmp.ne.s32.totalorder %s127, %s129
      %p136 = scmp.eq.s32.totalorder %s34, 2
      %p137 = por %p135, %p136
      %p138 = scmp.ne.s32.totalorder %s129, %s130
      %p139 = scmp.eq.s32.totalorder %s34, 0
      %p140 = por %p138, %p139
      %p141 = scmp.ne.s32.totalorder %s129, %s130
      %p142 = scmp.eq.s32.totalorder %s35, 2
      %p143 = por %p141, %p142
      %p145 = scmp.ne.s32.totalorder %s130, %s144
      %p146 = scmp.eq.s32.totalorder %s35, 0
      %p147 = por %p145, %p146
      %s149 = sadd.s32 %s148, 1
      %p152 = scmp.eq.s32.totalorder %s29, 2
      %p153 = scmp.ne.s32.totalorder %s148, %s150
      %p154 = scmp.eq.s32.totalorder %s29, 0
      %p155 = por %p153, %p154
      %p156 = scmp.ne.s32.totalorder %s148, %s150
      %p157 = scmp.eq.s32.totalorder %s34, 2
      %p158 = por %p156, %p157
      %p159 = scmp.ne.s32.totalorder %s150, %s151
      %p160 = scmp.eq.s32.totalorder %s34, 0
      %p161 = por %p159, %p160
      %p162 = scmp.ne.s32.totalorder %s150, %s151
      %p163 = scmp.eq.s32.totalorder %s35, 2
      %p164 = por %p162, %p163
      %p166 = scmp.ne.s32.totalorder %s151, %s165
      %p167 = scmp.eq.s32.totalorder %s35, 0
      %p168 = por %p166, %p167
      %s170 = sadd.s32 %s169, 1
      %p173 = scmp.eq.s32.totalorder %s29, 2
      %p174 = scmp.ne.s32.totalorder %s169, %s171
      %p175 = scmp.eq.s32.totalorder %s29, 0
      %p176 = por %p174, %p175
      %p177 = scmp.ne.s32.totalorder %s169, %s171
      %p178 = scmp.eq.s32.totalorder %s34, 2
      %p179 = por %p177, %p178
      %p180 = scmp.ne.s32.totalorder %s171, %s172
      %p181 = scmp.eq.s32.totalorder %s34, 0
      %p182 = por %p180, %p181
      %p183 = scmp.ne.s32.totalorder %s171, %s172
      %p184 = scmp.eq.s32.totalorder %s35, 2
      %p185 = por %p183, %p184
      %p187 = scmp.ne.s32.totalorder %s172, %s186
      %p188 = scmp.eq.s32.totalorder %s35, 0
      %p189 = por %p187, %p188
      %s191 = sadd.s32 %s190, 1
      %p194 = scmp.eq.s32.totalorder %s29, 2
      %p195 = scmp.ne.s32.totalorder %s190, %s192
      %p196 = scmp.eq.s32.totalorder %s29, 0
      %p197 = por %p195, %p196
      %p198 = scmp.ne.s32.totalorder %s190, %s192
      %p199 = scmp.eq.s32.totalorder %s34, 2
      %p200 = por %p198, %p199
      %p201 = scmp.ne.s32.totalorder %s192, %s193
      %p202 = scmp.eq.s32.totalorder %s34, 0
      %p203 = por %p201, %p202
      %p204 = scmp.ne.s32.totalorder %s192, %s193
      %p205 = scmp.eq.s32.totalorder %s35, 2
      %p206 = por %p204, %p205
      %p208 = scmp.ne.s32.totalorder %s193, %s207
      %p209 = scmp.eq.s32.totalorder %s35, 0
      %p210 = por %p208, %p209
      %s212 = sadd.s32 %s211, 1
      %p215 = scmp.eq.s32.totalorder %s29, 2
      %p216 = scmp.ne.s32.totalorder %s211, %s213
      %p217 = scmp.eq.s32.totalorder %s29, 0
      %p218 = por %p216, %p217
      %p219 = scmp.ne.s32.totalorder %s211, %s213
      %p220 = scmp.eq.s32.totalorder %s34, 2
      %p221 = por %p219, %p220
      %p222 = scmp.ne.s32.totalorder %s213, %s214
      %p223 = scmp.eq.s32.totalorder %s34, 0
      %p224 = por %p222, %p223
      %p225 = scmp.ne.s32.totalorder %s213, %s214
      %p226 = scmp.eq.s32.totalorder %s35, 2
      %p227 = por %p225, %p226
      %p229 = scmp.ne.s32.totalorder %s214, %s228
      %p230 = scmp.eq.s32.totalorder %s35, 0
      %p231 = por %p229, %p230
      %s233 = sadd.s32 %s232, 1
      %p236 = scmp.eq.s32.totalorder %s29, 2
      %p237 = scmp.ne.s32.totalorder %s232, %s234
      %p238 = scmp.eq.s32.totalorder %s29, 0
      %p239 = por %p237, %p238
      %p240 = scmp.ne.s32.totalorder %s232, %s234
      %p241 = scmp.eq.s32.totalorder %s34, 2
      %p242 = por %p240, %p241
      %p243 = scmp.ne.s32.totalorder %s234, %s235
      %p244 = scmp.eq.s32.totalorder %s34, 0
      %p245 = por %p243, %p244
      %p246 = scmp.ne.s32.totalorder %s234, %s235
      %p247 = scmp.eq.s32.totalorder %s35, 2
      %p248 = por %p246, %p247
      %p250 = scmp.ne.s32.totalorder %s235, %s249
      %p251 = scmp.eq.s32.totalorder %s35, 0
      %p252 = por %p250, %p251
      %s253 = ssub.s32 %s37, %s44
      %s254 = ssub.s32 %s36, %s48
      %s255 = sor.u32 %s253, %s254
      %p256 = scmp.eq.s32.totalorder %s255, 0
      %s258 = sadd.s32 %s257, 1
      %s259 = scalar_select %p256, %s257, %s258
      %p262 = pneg %p256
      %p263 = scmp.eq.s32.totalorder %s29, 2
      %p264 = por %p262, %p263
      %p265 = scmp.ne.s32.totalorder %s257, %s260
      %p266 = scmp.eq.s32.totalorder %s29, 0
      %p267 = por %p265, %p266
      %p268 = scmp.ne.s32.totalorder %s257, %s260
      %p269 = scmp.eq.s32.totalorder %s34, 2
      %p270 = por %p268, %p269
      %p271 = scmp.ne.s32.totalorder %s260, %s261
      %p272 = scmp.eq.s32.totalorder %s34, 0
      %p273 = por %p271, %p272
      %p274 = scmp.ne.s32.totalorder %s260, %s261
      %p275 = scmp.eq.s32.totalorder %s35, 2
      %p276 = por %p274, %p275
      %p278 = scmp.ne.s32.totalorder %s261, %s277
      %p279 = scmp.eq.s32.totalorder %s35, 0
      %p280 = por %p278, %p279
      %p281 = scmp.le.s32.totalorder 1, %s29
      %p282 = scmp.lt.s32.totalorder %s29, 4
      %p283 = pnand %p281, %p282
      %p284 = pneg %p283
      // Predicated region
      $region9: #{tpu_custom_call.1} parent=5 // pred_check
        _
      $region10: #{tpu_custom_call.1} parent=5 // pred_check_branch
        %286 = sbr.rel (%p283) target = $region12
      $region11: #{tpu_custom_call.1} parent=5 // pred_region
        %s287 = ssub.s32 %s29, 1
        // Predicated region
        $region13: #{tpu_custom_call.1} parent=11 // pred_check
          %p288 = pneg %p67
        $region14: #{tpu_custom_call.1} parent=11 // pred_check_branch
          %290 = sbr.rel (%p288) target = $region16
        $region15: #{tpu_custom_call.1} parent=11 // pred_region
          %s291 = smul.u32 2, %s39
          %s293 = ssub.s32 512, 512
          %294 = vsyncadd [#allocation5], %s293
          %s295 = smul.addr %s291, 2
          %s296 = smul.addr %s295, 128
          %s297 = scalar_lea.hbm %s1, %s296
          %s298 = sshll.u32 [#allocation4], 4
          %s299 = int_to_ptr.vmem [resolvable:$true] %s298
          %304 = dma.hbm_to_vmem [thread:$0]  %s297, 512, %s299, [#allocation5], 128, 128, 8
        $region16: #{tpu_custom_call.1} parent=11 // pred_fallthru
          _
        // Predicated region
        $region17: #{tpu_custom_call.1} parent=11 // pred_check
          %p305 = pneg %p140
        $region18: #{tpu_custom_call.1} parent=11 // pred_check_branch
          %307 = sbr.rel (%p305) target = $region20
        $region19: #{tpu_custom_call.1} parent=11 // pred_region
          %s309 = ssub.s32 4096, 4096
          %310 = vsyncadd [#allocation11], %s309
          %s311 = sshll.u32 [#allocation10], 4
          %s312 = int_to_ptr.vmem [resolvable:$true] %s311
          %317 = dma.hbm_to_vmem [thread:$0]  %s4, 4096, %s312, [#allocation11], 256, 256, 16
        $region20: #{tpu_custom_call.1} parent=11 // pred_fallthru
          _
        // Predicated region
        $region21: #{tpu_custom_call.1} parent=11 // pred_check
          %p318 = pneg %p161
        $region22: #{tpu_custom_call.1} parent=11 // pred_check_branch
          %320 = sbr.rel (%p318) target = $region24
        $region23: #{tpu_custom_call.1} parent=11 // pred_region
          _
        $region24: #{tpu_custom_call.1} parent=11 // pred_fallthru
          _
        // Predicated region
        $region25: #{tpu_custom_call.1} parent=11 // pred_check
          %p321 = pneg %p182
        $region26: #{tpu_custom_call.1} parent=11 // pred_check_branch
          %323 = sbr.rel (%p321) target = $region28
        $region27: #{tpu_custom_call.1} parent=11 // pred_region
          %s325 = ssub.s32 2048, 2048
          %326 = vsyncadd [#allocation11], %s325
          %s327 = sshll.u32 [#allocation12], 4
          %s328 = int_to_ptr.vmem [resolvable:$true] %s327
          %333 = dma.hbm_to_vmem [thread:$0]  %s6, 2048, %s328, [#allocation11], 128, 128, 8
        $region28: #{tpu_custom_call.1} parent=11 // pred_fallthru
          _
        // Predicated region
        $region29: #{tpu_custom_call.1} parent=11 // pred_check
          %p334 = pneg %p203
        $region30: #{tpu_custom_call.1} parent=11 // pred_check_branch
          %336 = sbr.rel (%p334) target = $region32
        $region31: #{tpu_custom_call.1} parent=11 // pred_region
          _
        $region32: #{tpu_custom_call.1} parent=11 // pred_fallthru
          _
        // Predicated region
        $region33: #{tpu_custom_call.1} parent=11 // pred_check
          %p337 = pneg %p224
        $region34: #{tpu_custom_call.1} parent=11 // pred_check_branch
          %339 = sbr.rel (%p337) target = $region36
        $region35: #{tpu_custom_call.1} parent=11 // pred_region
          %s341 = ssub.s32 2048, 2048
          %342 = vsyncadd [#allocation14], %s341
          %s343 = sshll.u32 [#allocation13], 4
          %s344 = int_to_ptr.vmem [resolvable:$true] %s343
          %349 = dma.hbm_to_vmem [thread:$0]  %s8, 2048, %s344, [#allocation14], 128, 128, 8
        $region36: #{tpu_custom_call.1} parent=11 // pred_fallthru
          _
        // Predicated region
        $region37: #{tpu_custom_call.1} parent=11 // pred_check
          %p350 = pneg %p245
        $region38: #{tpu_custom_call.1} parent=11 // pred_check_branch
          %352 = sbr.rel (%p350) target = $region40
        $region39: #{tpu_custom_call.1} parent=11 // pred_region
          _
        $region40: #{tpu_custom_call.1} parent=11 // pred_fallthru
          _
      $region12: #{tpu_custom_call.1} parent=5 // pred_fallthru
        _
      %p353 = scmp.lt.s32.totalorder %s29, 3
      // Predicated region
      $region41: #{tpu_custom_call.1} parent=5 // pred_check
        %p354 = pneg %p353
      $region42: #{tpu_custom_call.1} parent=5 // pred_check_branch
        %356 = sbr.rel (%p354) target = $region44
      $region43: #{tpu_custom_call.1} parent=5 // pred_region
        // Predicated region
        $region45: #{tpu_custom_call.1} parent=43 // pred_check
          %p357 = pneg %p87
        $region46: #{tpu_custom_call.1} parent=43 // pred_check_branch
          %359 = sbr.rel (%p357) target = $region48
        $region47: #{tpu_custom_call.1} parent=43 // pred_region
          %s360 = sand.u32 %s29, 1
          %s361 = scalar_lea.sflag [#allocation8], %s360
          %s362 = sand.u32 %s77, 1
          %s363 = smul.addr %s362, 128
          %s364 = scalar_lea.vmem [#allocation7], %s363
          %s366 = ssub.s32 2048, 2048
          %367 = vsyncadd %s361, %s366
          %s368 = smul.addr %s36, 16
          %s369 = smul.addr %s368, 128
          %s370 = scalar_lea.hbm %s2, %s369
          %s371 = sshll.u32 %s364, 4
          %s372 = int_to_ptr.vmem [resolvable:$true] %s371
          %377 = dma.hbm_to_vmem [thread:$0]  %s370, 2048, %s372, %s361, 128, 128, 8
        $region48: #{tpu_custom_call.1} parent=43 // pred_fallthru
          _
        // Predicated region
        $region49: #{tpu_custom_call.1} parent=43 // pred_check
          %p378 = pneg %p113
        $region50: #{tpu_custom_call.1} parent=43 // pred_check_branch
          %380 = sbr.rel (%p378) target = $region52
        $region51: #{tpu_custom_call.1} parent=43 // pred_region
          %s381 = sand.u32 %s29, 1
          %s382 = scalar_lea.sflag [#allocation8], %s381
          %s383 = sand.u32 %s103, 1
          %s384 = smul.addr %s383, 128
          %s385 = scalar_lea.vmem [#allocation9], %s384
          %s387 = ssub.s32 2048, 2048
          %388 = vsyncadd %s382, %s387
          %s389 = smul.addr %s36, 16
          %s390 = smul.addr %s389, 128
          %s391 = scalar_lea.hbm %s3, %s390
          %s392 = sshll.u32 %s385, 4
          %s393 = int_to_ptr.vmem [resolvable:$true] %s392
          %398 = dma.hbm_to_vmem [thread:$0]  %s391, 2048, %s393, %s382, 128, 128, 8
        $region52: #{tpu_custom_call.1} parent=43 // pred_fallthru
          _
      $region44: #{tpu_custom_call.1} parent=5 // pred_fallthru
        _
      %p399 = scmp.le.s32.totalorder 1, %s29
      %p400 = scmp.lt.s32.totalorder %s29, 4
      %p401 = pnand %p399, %p400
      %p402 = pneg %p401
      // Predicated region
      $region53: #{tpu_custom_call.1} parent=5 // pred_check
        _
      $region54: #{tpu_custom_call.1} parent=5 // pred_check_branch
        %404 = sbr.rel (%p401) target = $region56
      $region55: #{tpu_custom_call.1} parent=5 // pred_region
        %s405 = ssub.s32 %s29, 1
        // Predicated region
        $region57: #{tpu_custom_call.1} parent=55 // pred_check
          %p406 = pneg %p67
        $region58: #{tpu_custom_call.1} parent=55 // pred_check_branch
          %408 = sbr.rel (%p406) target = $region60
        $region59: #{tpu_custom_call.1} parent=55 // pred_region
          %409 = dma.done [#allocation5], 512
        $region60: #{tpu_custom_call.1} parent=55 // pred_fallthru
          _
        %s410 = sand.u32 %s34, 1
        %s411 = scalar_lea.sflag [#allocation8], %s410
        %s412 = sand.u32 %s80, 1
        %s413 = smul.addr %s412, 128
        %s414 = scalar_lea.vmem [#allocation7], %s413
        // Predicated region
        $region61: #{tpu_custom_call.1} parent=55 // pred_check
          %p415 = pneg %p93
        $region62: #{tpu_custom_call.1} parent=55 // pred_check_branch
          %417 = sbr.rel (%p415) target = $region64
        $region63: #{tpu_custom_call.1} parent=55 // pred_region
          %418 = dma.done %s411, 2048
        $region64: #{tpu_custom_call.1} parent=55 // pred_fallthru
          _
        %s419 = sand.u32 %s34, 1
        %s420 = scalar_lea.sflag [#allocation8], %s419
        %s421 = sand.u32 %s106, 1
        %s422 = smul.addr %s421, 128
        %s423 = scalar_lea.vmem [#allocation9], %s422
        // Predicated region
        $region65: #{tpu_custom_call.1} parent=55 // pred_check
          %p424 = pneg %p119
        $region66: #{tpu_custom_call.1} parent=55 // pred_check_branch
          %426 = sbr.rel (%p424) target = $region68
        $region67: #{tpu_custom_call.1} parent=55 // pred_region
          %427 = dma.done %s420, 2048
        $region68: #{tpu_custom_call.1} parent=55 // pred_fallthru
          _
        // Predicated region
        $region69: #{tpu_custom_call.1} parent=55 // pred_check
          %p428 = pneg %p140
        $region70: #{tpu_custom_call.1} parent=55 // pred_check_branch
          %430 = sbr.rel (%p428) target = $region72
        $region71: #{tpu_custom_call.1} parent=55 // pred_region
          %431 = dma.done [#allocation11], 4096
        $region72: #{tpu_custom_call.1} parent=55 // pred_fallthru
          _
        // Predicated region
        $region73: #{tpu_custom_call.1} parent=55 // pred_check
          %p432 = pneg %p182
        $region74: #{tpu_custom_call.1} parent=55 // pred_check_branch
          %434 = sbr.rel (%p432) target = $region76
        $region75: #{tpu_custom_call.1} parent=55 // pred_region
          %435 = dma.done [#allocation11], 2048
        $region76: #{tpu_custom_call.1} parent=55 // pred_fallthru
          _
        // Predicated region
        $region77: #{tpu_custom_call.1} parent=55 // pred_check
          %p436 = pneg %p224
        $region78: #{tpu_custom_call.1} parent=55 // pred_check_branch
          %438 = sbr.rel (%p436) target = $region80
        $region79: #{tpu_custom_call.1} parent=55 // pred_region
          %439 = dma.done [#allocation14], 2048
        $region80: #{tpu_custom_call.1} parent=55 // pred_fallthru
          _
        %p440 = pneg %p67
        %p441 = pneg %p64
        %s442 = sand.u32 %s34, 1
        %s443 = scalar_lea.sflag [#allocation8], %s442
        %s444 = sand.u32 %s80, 1
        %s445 = smul.addr %s444, 128
        %s446 = scalar_lea.vmem [#allocation7], %s445
        %p447 = pneg %p93
        %p448 = pneg %p90
        %s449 = sand.u32 %s34, 1
        %s450 = scalar_lea.sflag [#allocation8], %s449
        %s451 = sand.u32 %s106, 1
        %s452 = smul.addr %s451, 128
        %s453 = scalar_lea.vmem [#allocation9], %s452
        %p454 = pneg %p119
        %p455 = pneg %p116
        %p456 = pneg %p140
        %p457 = pneg %p137
        %p458 = pneg %p161
        %p459 = pneg %p158
        %p460 = pneg %p182
        %p461 = pneg %p179
        %p462 = pneg %p203
        %p463 = pneg %p200
        %p464 = pneg %p224
        %p465 = pneg %p221
        %p466 = pneg %p245
        %p467 = pneg %p242
        %p468 = pneg %p273
        %p469 = pneg %p270
        %s470 = sand.u32 %s260, 1
        %s471 = scalar_lea.sflag [#allocation6], %s470
        %s472 = sand.u32 %s260, 1
        %s473 = smul.addr %s472, 32
        %s474 = scalar_lea.vmem [#allocation15], %s473
        %s475 = smul.u32 2, %s39
        %s476 = smul.u32 2, %s39
        %s477 = sld [smem:[#allocation3 + %s38]]
        %v478 = vld [vmem:[#allocation4] sm:$0xff]
        %v479 = vld [vmem:[#allocation4 + $0x8] sm:$0xff]
        %v480 = vld [vmem:[#allocation4 + $0x10] sm:$0xff]
        %v481 = vld [vmem:[#allocation4 + $0x18] sm:$0xff]
        %v482 = vld [vmem:[%s423] sm:$0xff]
        %v483 = vld [vmem:[%s423 + $0x8] sm:$0xff]
        %v484 = vld [vmem:[%s423 + $0x10] sm:$0xff]
        %v485 = vld [vmem:[%s423 + $0x18] sm:$0xff]
        %v486 = vld [vmem:[%s423 + $0x20] sm:$0xff]
        %v487 = vld [vmem:[%s423 + $0x28] sm:$0xff]
        %v488 = vld [vmem:[%s423 + $0x30] sm:$0xff]
        %v489 = vld [vmem:[%s423 + $0x38] sm:$0xff]
        %v490 = vld [vmem:[%s423 + $0x40] sm:$0xff]
        %v491 = vld [vmem:[%s423 + $0x48] sm:$0xff]
        %v492 = vld [vmem:[%s423 + $0x50] sm:$0xff]
        %v493 = vld [vmem:[%s423 + $0x58] sm:$0xff]
        %v494 = vld [vmem:[%s423 + $0x60] sm:$0xff]
        %v495 = vld [vmem:[%s423 + $0x68] sm:$0xff]
        %v496 = vld [vmem:[%s423 + $0x70] sm:$0xff]
        %v497 = vld [vmem:[%s423 + $0x78] sm:$0xff]
        %498 = vmatprep.subr.mxu0 0.0
        %499 = vmatpush1.msra.mxu0 %v482
        %500 = vmatprep.subr.mxu0 0.0
        %501 = vmatpush1.msra.mxu0 %v483
        %502 = vmatprep.subr.mxu0 0.0
        %503 = vmatpush1.msra.mxu0 %v484
        %504 = vmatprep.subr.mxu0 0.0
        %505 = vmatpush1.msra.mxu0 %v485
        %506 = vmatprep.subr.mxu0 0.0
        %507 = vmatpush1.msra.mxu0 %v486
        %508 = vmatprep.subr.mxu0 0.0
        %509 = vmatpush1.msra.mxu0 %v487
        %510 = vmatprep.subr.mxu0 0.0
        %511 = vmatpush1.msra.mxu0 %v488
        %512 = vmatprep.subr.mxu0 0.0
        %513 = vmatpush1.msra.mxu0 %v489
        %514 = vmatprep.subr.mxu0 0.0
        %515 = vmatpush1.msra.mxu0 %v490
        %516 = vmatprep.subr.mxu0 0.0
        %517 = vmatpush1.msra.mxu0 %v491
        %518 = vmatprep.subr.mxu0 0.0
        %519 = vmatpush1.msra.mxu0 %v492
        %520 = vmatprep.subr.mxu0 0.0
        %521 = vmatpush1.msra.mxu0 %v493
        %522 = vmatprep.subr.mxu0 0.0
        %523 = vmatpush1.msra.mxu0 %v494
        %524 = vmatprep.subr.mxu0 0.0
        %525 = vmatpush1.msra.mxu0 %v495
        %526 = vmatprep.subr.mxu0 0.0
        %527 = vmatpush1.msra.mxu0 %v496
        %528 = vmatprep.subr.mxu0 0.0
        %529 = vmatpush1.msra.mxu0 %v497
        %530 = vmatprep.subr.mxu0 0.0
        %531 = vmatpush1.msra.mxu0 0.0
        %532 = vmatprep.subr.mxu0 0.0
        %533 = vmatpush1.msra.mxu0 0.0
        %534 = vmatprep.subr.mxu0 0.0
        %535 = vmatpush1.msra.mxu0 0.0
        %536 = vmatprep.subr.mxu0 0.0
        %537 = vmatpush1.msra.mxu0 0.0
        %538 = vmatprep.subr.mxu0 0.0
        %539 = vmatpush1.msra.mxu0 0.0
        %540 = vmatprep.subr.mxu0 0.0
        %541 = vmatpush1.msra.mxu0 0.0
        %542 = vmatprep.subr.mxu0 0.0
        %543 = vmatpush1.msra.mxu0 0.0
        %544 = vmatprep.subr.mxu0 0.0
        %545 = vmatpush1.msra.mxu0 0.0
        %546 = vmatprep.subr.mxu0 0.0
        %547 = vmatpush1.msra.mxu0 0.0
        %548 = vmatprep.subr.mxu0 0.0
        %549 = vmatpush1.msra.mxu0 0.0
        %550 = vmatprep.subr.mxu0 0.0
        %551 = vmatpush1.msra.mxu0 0.0
        %552 = vmatprep.subr.mxu0 0.0
        %553 = vmatpush1.msra.mxu0 0.0
        %554 = vmatprep.subr.mxu0 0.0
        %555 = vmatpush1.msra.mxu0 0.0
        %556 = vmatprep.subr.mxu0 0.0
        %557 = vmatpush1.msra.mxu0 0.0
        %558 = vmatprep.subr.mxu0 0.0
        %559 = vmatpush1.msra.mxu0 0.0
        %560 = vmatprep.subr.mxu0 0.0
        %561 = vmatpush1.msra.mxu0 0.0
        %562 = vmatprep.mubr.f32.mxu0 0.0
        %563 = vmatmul.mubr.f32.gmra.mrb[0].mxu0 %v478
        %v564 = vpop.f32.mrb[0].mxu0
        %v565 = vadd.f32 0.0, %v564
        %v566 = vpop.f32.mrb[0].mxu0
        %567 = vmatprep.mubr.f32.mxu0 0.0
        %568 = vmatmul.mubr.f32.gmra.mrb[0].mxu0 %v479
        %v569 = vpop.f32.mrb[0].mxu0
        %v570 = vadd.f32 0.0, %v569
        %v571 = vpop.f32.mrb[0].mxu0
        %572 = vmatprep.mubr.f32.mxu0 0.0
        %573 = vmatmul.mubr.f32.gmra.mrb[0].mxu0 %v480
        %v574 = vpop.f32.mrb[0].mxu0
        %v575 = vadd.f32 0.0, %v574
        %v576 = vpop.f32.mrb[0].mxu0
        %577 = vmatprep.mubr.f32.mxu0 0.0
        %578 = vmatmul.mubr.f32.gmra.mrb[0].mxu0 %v481
        %v579 = vpop.f32.mrb[0].mxu0
        %v580 = vadd.f32 0.0, %v579
        %v581 = vpop.f32.mrb[0].mxu0
        %582 = vdwg.mxu0
        %vm583 = vcmp.ge.f32.partialorder %v565, 0.0
        %vm584 = vcmp.ge.f32.partialorder %v570, 0.0
        %vm585 = vcmp.ge.f32.partialorder %v575, 0.0
        %vm586 = vcmp.ge.f32.partialorder %v580, 0.0
        %v587 = vmul.f32 %v565, 0.1
        %v588 = vmul.f32 %v570, 0.1
        %v589 = vmul.f32 %v575, 0.1
        %v590 = vmul.f32 %v580, 0.1
        %v591 = vsel %vm583, %v565, %v587
        %v592 = vsel %vm584, %v570, %v588
        %v593 = vsel %vm585, %v575, %v589
        %v594 = vsel %vm586, %v580, %v590
        %v595 = vmul.f32 %v591, %v591
        %v596 = vmul.f32 %v592, %v592
        %v597 = vmul.f32 %v593, %v593
        %v598 = vmul.f32 %v594, %v594
        %v599 = vadd.f32 %v595, %v596
        %v600 = vrot.slane %v599, 4
        %v601 = vadd.f32 %v599, %v600
        %v602 = vrot.slane %v601, 2
        %v603 = vadd.f32 %v601, %v602
        %v604 = vrot.slane %v603, 1
        %v605 = vadd.f32 %v603, %v604
        %v606 = vadd.f32 %v597, %v598
        %v607 = vrot.slane %v606, 4
        %v608 = vadd.f32 %v606, %v607
        %v609 = vrot.slane %v608, 2
        %v610 = vadd.f32 %v608, %v609
        %v611 = vrot.slane %v610, 1
        %v612 = vadd.f32 %v610, %v611
        %v613 = vmax.f32 %v605, 1e-24
        %v614 = vmax.f32 %v612, 1e-24
        %v615 = vrsqrt.pop %v613
        %v616 = vrsqrt.pop %v614
        %v617 = vmul.f32 %v615, 4.0
        %v618 = vmul.f32 %v616, 4.0
        %v619 = vmul.f32 %v591, %v617
        %v620 = vmul.f32 %v592, %v617
        %v621 = vmul.f32 %v593, %v618
        %v622 = vmul.f32 %v594, %v618
        %v623 = vlaneseq
        %v624 = vand.u32 %v623, 127
        %v625 = vstv %s477
        %vm626 = vcmp.lt.s32.totalorder %v624, %v625
        %v627 = vsel %vm626, 1, 0
        %vm628 = vcmp.eq.s32.totalorder %v627, 1
        %v629 = vsel %vm628, %v619, -1e+30
        %v630 = vsel %vm628, %v620, -1e+30
        %v631 = vsel %vm628, %v621, -1e+30
        %v632 = vsel %vm628, %v622, -1e+30
        %633 = vmax.xlane.f32.xlu0 %v629
        %v634 = vpop.xlane.xlu0 %633
        %635 = vmax.xlane.f32.xlu0 %v630
        %v636 = vpop.xlane.xlu0 %635
        %637 = vmax.xlane.f32.xlu0 %v631
        %v638 = vpop.xlane.xlu0 %637
        %639 = vmax.xlane.f32.xlu0 %v632
        %v640 = vpop.xlane.xlu0 %639
        %v641 = vsub.f32 %v629, %v634
        %v642 = vsub.f32 %v630, %v636
        %v643 = vsub.f32 %v631, %v638
        %v644 = vsub.f32 %v632, %v640
        %v645 = vmul.f32 %v641, 1.442695
        %v646 = vpow.pop %v645
        %v647 = vmul.f32 %v642, 1.442695
        %v648 = vpow.pop %v647
        %v649 = vmul.f32 %v643, 1.442695
        %v650 = vpow.pop %v649
        %v651 = vmul.f32 %v644, 1.442695
        %v652 = vpow.pop %v651
        %653 = vadd.xlane.f32.xlu0 %v646
        %v654 = vpop.xlane.xlu0 %653
        %655 = vadd.xlane.f32.xlu0 %v648
        %v656 = vpop.xlane.xlu0 %655
        %657 = vadd.xlane.f32.xlu0 %v650
        %v658 = vpop.xlane.xlu0 %657
        %659 = vadd.xlane.f32.xlu0 %v652
        %v660 = vpop.xlane.xlu0 %659
        %v661 = vrcp.pop %v654
        %v662 = vrcp.pop %v656
        %v663 = vrcp.pop %v658
        %v664 = vrcp.pop %v660
        %v665 = vmul.f32 %v646, %v661
        %v666 = vmul.f32 %v648, %v662
        %v667 = vmul.f32 %v650, %v663
        %v668 = vmul.f32 %v652, %v664
        %v669 = vld [vmem:[%s414] sm:$0xff]
        %v670 = vld [vmem:[%s414 + $0x8] sm:$0xff]
        %v671 = vld [vmem:[%s414 + $0x10] sm:$0xff]
        %v672 = vld [vmem:[%s414 + $0x18] sm:$0xff]
        %v673 = vld [vmem:[%s414 + $0x20] sm:$0xff]
        %v674 = vld [vmem:[%s414 + $0x28] sm:$0xff]
        %v675 = vld [vmem:[%s414 + $0x30] sm:$0xff]
        %v676 = vld [vmem:[%s414 + $0x38] sm:$0xff]
        %v677 = vld [vmem:[%s414 + $0x40] sm:$0xff]
        %v678 = vld [vmem:[%s414 + $0x48] sm:$0xff]
        %v679 = vld [vmem:[%s414 + $0x50] sm:$0xff]
        %v680 = vld [vmem:[%s414 + $0x58] sm:$0xff]
        %v681 = vld [vmem:[%s414 + $0x60] sm:$0xff]
        %v682 = vld [vmem:[%s414 + $0x68] sm:$0xff]
        %v683 = vld [vmem:[%s414 + $0x70] sm:$0xff]
        %v684 = vld [vmem:[%s414 + $0x78] sm:$0xff]
        %685 = vmatprep.subr.mxu0 0.0
        %686 = vmatpush1.msra.mxu0 %v669
        %687 = vmatprep.subr.mxu0 0.0
        %688 = vmatpush1.msra.mxu0 %v670
        %689 = vmatprep.subr.mxu0 0.0
        %690 = vmatpush1.msra.mxu0 %v671
        %691 = vmatprep.subr.mxu0 0.0
        %692 = vmatpush1.msra.mxu0 %v672
        %693 = vmatprep.subr.mxu0 0.0
        %694 = vmatpush1.msra.mxu0 %v673
        %695 = vmatprep.subr.mxu0 0.0
        %696 = vmatpush1.msra.mxu0 %v674
        %697 = vmatprep.subr.mxu0 0.0
        %698 = vmatpush1.msra.mxu0 %v675
        %699 = vmatprep.subr.mxu0 0.0
        %700 = vmatpush1.msra.mxu0 %v676
        %701 = vmatprep.subr.mxu0 0.0
        %702 = vmatpush1.msra.mxu0 %v677
        %703 = vmatprep.subr.mxu0 0.0
        %704 = vmatpush1.msra.mxu0 %v678
        %705 = vmatprep.subr.mxu0 0.0
        %706 = vmatpush1.msra.mxu0 %v679
        %707 = vmatprep.subr.mxu0 0.0
        %708 = vmatpush1.msra.mxu0 %v680
        %709 = vmatprep.subr.mxu0 0.0
        %710 = vmatpush1.msra.mxu0 %v681
        %711 = vmatprep.subr.mxu0 0.0
        %712 = vmatpush1.msra.mxu0 %v682
        %713 = vmatprep.subr.mxu0 0.0
        %714 = vmatpush1.msra.mxu0 %v683
        %715 = vmatprep.subr.mxu0 0.0
        %716 = vmatpush1.msra.mxu0 %v684
        %717 = vmatprep.subr.mxu0 0.0
        %718 = vmatpush1.msra.mxu0 0.0
        %719 = vmatprep.subr.mxu0 0.0
        %720 = vmatpush1.msra.mxu0 0.0
        %721 = vmatprep.subr.mxu0 0.0
        %722 = vmatpush1.msra.mxu0 0.0
        %723 = vmatprep.subr.mxu0 0.0
        %724 = vmatpush1.msra.mxu0 0.0
        %725 = vmatprep.subr.mxu0 0.0
        %726 = vmatpush1.msra.mxu0 0.0
        %727 = vmatprep.subr.mxu0 0.0
        %728 = vmatpush1.msra.mxu0 0.0
        %729 = vmatprep.subr.mxu0 0.0
        %730 = vmatpush1.msra.mxu0 0.0
        %731 = vmatprep.subr.mxu0 0.0
        %732 = vmatpush1.msra.mxu0 0.0
        %733 = vmatprep.subr.mxu0 0.0
        %734 = vmatpush1.msra.mxu0 0.0
        %735 = vmatprep.subr.mxu0 0.0
        %736 = vmatpush1.msra.mxu0 0.0
        %737 = vmatprep.subr.mxu0 0.0
        %738 = vmatpush1.msra.mxu0 0.0
        %739 = vmatprep.subr.mxu0 0.0
        %740 = vmatpush1.msra.mxu0 0.0
        %741 = vmatprep.subr.mxu0 0.0
        %742 = vmatpush1.msra.mxu0 0.0
        %743 = vmatprep.subr.mxu0 0.0
        %744 = vmatpush1.msra.mxu0 0.0
        %745 = vmatprep.subr.mxu0 0.0
        %746 = vmatpush1.msra.mxu0 0.0
        %747 = vmatprep.subr.mxu0 0.0
        %748 = vmatpush1.msra.mxu0 0.0
        %749 = vmatprep.mubr.f32.mxu0 0.0
        %750 = vmatmul.mubr.f32.gmra.mrb[0].mxu0 %v665
        %v751 = vpop.f32.mrb[0].mxu0
        %v752 = vadd.f32 0.0, %v751
        %v753 = vpop.f32.mrb[0].mxu0
        %754 = vmatprep.mubr.f32.mxu0 0.0
        %755 = vmatmul.mubr.f32.gmra.mrb[0].mxu0 %v666
        %v756 = vpop.f32.mrb[0].mxu0
        %v757 = vadd.f32 0.0, %v756
        %v758 = vpop.f32.mrb[0].mxu0
        %759 = vmatprep.mubr.f32.mxu0 0.0
        %760 = vmatmul.mubr.f32.gmra.mrb[0].mxu0 %v667
        %v761 = vpop.f32.mrb[0].mxu0
        %v762 = vadd.f32 0.0, %v761
        %v763 = vpop.f32.mrb[0].mxu0
        %764 = vmatprep.mubr.f32.mxu0 0.0
        %765 = vmatmul.mubr.f32.gmra.mrb[0].mxu0 %v668
        %v766 = vpop.f32.mrb[0].mxu0
        %v767 = vadd.f32 0.0, %v766
        %v768 = vpop.f32.mrb[0].mxu0
        %769 = vdwg.mxu0
        %v770 = vld [vmem:[#allocation10] sm:$0xff]
        %v771 = vld [vmem:[#allocation10 + $0x8] sm:$0xff]
        %v772 = vld [vmem:[#allocation10 + $0x10] sm:$0xff]
        %v773 = vld [vmem:[#allocation10 + $0x18] sm:$0xff]
        %v774 = vld [vmem:[#allocation10 + $0x20] sm:$0xff]
        %v775 = vld [vmem:[#allocation10 + $0x28] sm:$0xff]
        %v776 = vld [vmem:[#allocation10 + $0x30] sm:$0xff]
        %v777 = vld [vmem:[#allocation10 + $0x38] sm:$0xff]
        %v778 = vld [vmem:[#allocation10 + $0x40] sm:$0xff]
        %v779 = vld [vmem:[#allocation10 + $0x48] sm:$0xff]
        %v780 = vld [vmem:[#allocation10 + $0x50] sm:$0xff]
        %v781 = vld [vmem:[#allocation10 + $0x58] sm:$0xff]
        %v782 = vld [vmem:[#allocation10 + $0x60] sm:$0xff]
        %v783 = vld [vmem:[#allocation10 + $0x68] sm:$0xff]
        %v784 = vld [vmem:[#allocation10 + $0x70] sm:$0xff]
        %v785 = vld [vmem:[#allocation10 + $0x78] sm:$0xff]
        %v786 = vld [vmem:[#allocation10 + $0x80] sm:$0xff]
        %v787 = vld [vmem:[#allocation10 + $0x88] sm:$0xff]
        %v788 = vld [vmem:[#allocation10 + $0x90] sm:$0xff]
        %v789 = vld [vmem:[#allocation10 + $0x98] sm:$0xff]
        %v790 = vld [vmem:[#allocation10 + $0xa0] sm:$0xff]
        %v791 = vld [vmem:[#allocation10 + $0xa8] sm:$0xff]
        %v792 = vld [vmem:[#allocation10 + $0xb0] sm:$0xff]
        %v793 = vld [vmem:[#allocation10 + $0xb8] sm:$0xff]
        %v794 = vld [vmem:[#allocation10 + $0xc0] sm:$0xff]
        %v795 = vld [vmem:[#allocation10 + $0xc8] sm:$0xff]
        %v796 = vld [vmem:[#allocation10 + $0xd0] sm:$0xff]
        %v797 = vld [vmem:[#allocation10 + $0xd8] sm:$0xff]
        %v798 = vld [vmem:[#allocation10 + $0xe0] sm:$0xff]
        %v799 = vld [vmem:[#allocation10 + $0xe8] sm:$0xff]
        %v800 = vld [vmem:[#allocation10 + $0xf0] sm:$0xff]
        %v801 = vld [vmem:[#allocation10 + $0xf8] sm:$0xff]
        %v802 = vld [vmem:[%s5] sm:$0x3]
        %v804 = vlaneseq
        %v805 = vshrl.u32 %v804, 7
        %v806 = vsub.s32 0, %v805
        %v807 = vrot.slane %v802, %v806
        %v808 = vlaneseq
        %v809 = vshrl.u32 %v808, 7
        %v810 = vsub.s32 1, %v809
        %v811 = vrot.slane %v802, %v810
        %814 = vmatprep.subr.mxu0 %v771
        %815 = vmatpush1.msra.mxu0 %v770
        %816 = vmatprep.subr.mxu0 %v773
        %817 = vmatpush1.msra.mxu0 %v772
        %818 = vmatprep.subr.mxu0 %v775
        %819 = vmatpush1.msra.mxu0 %v774
        %820 = vmatprep.subr.mxu0 %v777
        %821 = vmatpush1.msra.mxu0 %v776
        %822 = vmatprep.subr.mxu0 %v779
        %823 = vmatpush1.msra.mxu0 %v778
        %824 = vmatprep.subr.mxu0 %v781
        %825 = vmatpush1.msra.mxu0 %v780
        %826 = vmatprep.subr.mxu0 %v783
        %827 = vmatpush1.msra.mxu0 %v782
        %828 = vmatprep.subr.mxu0 %v785
        %829 = vmatpush1.msra.mxu0 %v784
        %830 = vmatprep.subr.mxu0 %v787
        %831 = vmatpush1.msra.mxu0 %v786
        %832 = vmatprep.subr.mxu0 %v789
        %833 = vmatpush1.msra.mxu0 %v788
        %834 = vmatprep.subr.mxu0 %v791
        %835 = vmatpush1.msra.mxu0 %v790
        %836 = vmatprep.subr.mxu0 %v793
        %837 = vmatpush1.msra.mxu0 %v792
        %838 = vmatprep.subr.mxu0 %v795
        %839 = vmatpush1.msra.mxu0 %v794
        %840 = vmatprep.subr.mxu0 %v797
        %841 = vmatpush1.msra.mxu0 %v796
        %842 = vmatprep.subr.mxu0 %v799
        %843 = vmatpush1.msra.mxu0 %v798
        %844 = vmatprep.subr.mxu0 %v801
        %845 = vmatpush1.msra.mxu0 %v800
        %846 = vmatprep.subr.mxu0 0.0
        %847 = vmatpush1.msra.mxu0 0.0
        %848 = vmatprep.subr.mxu0 0.0
        %849 = vmatpush1.msra.mxu0 0.0
        %850 = vmatprep.subr.mxu0 0.0
        %851 = vmatpush1.msra.mxu0 0.0
        %852 = vmatprep.subr.mxu0 0.0
        %853 = vmatpush1.msra.mxu0 0.0
        %854 = vmatprep.subr.mxu0 0.0
        %855 = vmatpush1.msra.mxu0 0.0
        %856 = vmatprep.subr.mxu0 0.0
        %857 = vmatpush1.msra.mxu0 0.0
        %858 = vmatprep.subr.mxu0 0.0
        %859 = vmatpush1.msra.mxu0 0.0
        %860 = vmatprep.subr.mxu0 0.0
        %861 = vmatpush1.msra.mxu0 0.0
        %862 = vmatprep.subr.mxu0 0.0
        %863 = vmatpush1.msra.mxu0 0.0
        %864 = vmatprep.subr.mxu0 0.0
        %865 = vmatpush1.msra.mxu0 0.0
        %866 = vmatprep.subr.mxu0 0.0
        %867 = vmatpush1.msra.mxu0 0.0
        %868 = vmatprep.subr.mxu0 0.0
        %869 = vmatpush1.msra.mxu0 0.0
        %870 = vmatprep.subr.mxu0 0.0
        %871 = vmatpush1.msra.mxu0 0.0
        %872 = vmatprep.subr.mxu0 0.0
        %873 = vmatpush1.msra.mxu0 0.0
        %874 = vmatprep.subr.mxu0 0.0
        %875 = vmatpush1.msra.mxu0 0.0
        %876 = vmatprep.subr.mxu0 0.0
        %877 = vmatpush1.msra.mxu0 0.0
        %878 = vmatprep.mubr.f32.mxu0 0.0
        %879 = vmatmul.mubr.f32.gmra.mrb[0].mxu0 %v752
        %v880 = vpop.f32.mrb[0].mxu0
        %v881 = vadd.f32 %v807, %v880
        %v882 = vpop.f32.mrb[0].mxu0
        %v883 = vadd.f32 %v811, %v882
        %884 = vmatprep.mubr.f32.mxu0 0.0
        %885 = vmatmul.mubr.f32.gmra.mrb[0].mxu0 %v757
        %v886 = vpop.f32.mrb[0].mxu0
        %v887 = vadd.f32 %v807, %v886
        %v888 = vpop.f32.mrb[0].mxu0
        %v889 = vadd.f32 %v811, %v888
        %890 = vmatprep.mubr.f32.mxu0 0.0
        %891 = vmatmul.mubr.f32.gmra.mrb[0].mxu0 %v762
        %v892 = vpop.f32.mrb[0].mxu0
        %v893 = vadd.f32 %v807, %v892
        %v894 = vpop.f32.mrb[0].mxu0
        %v895 = vadd.f32 %v811, %v894
        %896 = vmatprep.mubr.f32.mxu0 0.0
        %897 = vmatmul.mubr.f32.gmra.mrb[0].mxu0 %v767
        %v898 = vpop.f32.mrb[0].mxu0
        %v899 = vadd.f32 %v807, %v898
        %v900 = vpop.f32.mrb[0].mxu0
        %v901 = vadd.f32 %v811, %v900
        %902 = vdwg.mxu0
        %v903 = vtanh.pop %v881
        %v904 = vtanh.pop %v887
        %v905 = vtanh.pop %v893
        %v906 = vtanh.pop %v899
        %v907 = vmul.f32 %v478, %v903
        %v908 = vmul.f32 %v479, %v904
        %v909 = vmul.f32 %v480, %v905
        %v910 = vmul.f32 %v481, %v906
        %v911 = vadd.f32 %v907, %v883
        %v912 = vadd.f32 %v908, %v889
        %v913 = vadd.f32 %v909, %v895
        %v914 = vadd.f32 %v910, %v901
        %v915 = vld [vmem:[#allocation12] sm:$0xff]
        %v916 = vld [vmem:[#allocation12 + $0x8] sm:$0xff]
        %v917 = vld [vmem:[#allocation12 + $0x10] sm:$0xff]
        %v918 = vld [vmem:[#allocation12 + $0x18] sm:$0xff]
        %v919 = vld [vmem:[#allocation12 + $0x20] sm:$0xff]
        %v920 = vld [vmem:[#allocation12 + $0x28] sm:$0xff]
        %v921 = vld [vmem:[#allocation12 + $0x30] sm:$0xff]
        %v922 = vld [vmem:[#allocation12 + $0x38] sm:$0xff]
        %v923 = vld [vmem:[#allocation12 + $0x40] sm:$0xff]
        %v924 = vld [vmem:[#allocation12 + $0x48] sm:$0xff]
        %v925 = vld [vmem:[#allocation12 + $0x50] sm:$0xff]
        %v926 = vld [vmem:[#allocation12 + $0x58] sm:$0xff]
        %v927 = vld [vmem:[#allocation12 + $0x60] sm:$0xff]
        %v928 = vld [vmem:[#allocation12 + $0x68] sm:$0xff]
        %v929 = vld [vmem:[#allocation12 + $0x70] sm:$0xff]
        %v930 = vld [vmem:[#allocation12 + $0x78] sm:$0xff]
        %v931 = vld [vmem:[%s7] sm:$0x1]
        %v933 = vlaneseq
        %v934 = vshrl.u32 %v933, 7
        %v935 = vsub.s32 0, %v934
        %v936 = vrot.slane %v931, %v935
        %938 = vmatprep.subr.mxu0 0.0
        %939 = vmatpush1.msra.mxu0 %v915
        %940 = vmatprep.subr.mxu0 0.0
        %941 = vmatpush1.msra.mxu0 %v916
        %942 = vmatprep.subr.mxu0 0.0
        %943 = vmatpush1.msra.mxu0 %v917
        %944 = vmatprep.subr.mxu0 0.0
        %945 = vmatpush1.msra.mxu0 %v918
        %946 = vmatprep.subr.mxu0 0.0
        %947 = vmatpush1.msra.mxu0 %v919
        %948 = vmatprep.subr.mxu0 0.0
        %949 = vmatpush1.msra.mxu0 %v920
        %950 = vmatprep.subr.mxu0 0.0
        %951 = vmatpush1.msra.mxu0 %v921
        %952 = vmatprep.subr.mxu0 0.0
        %953 = vmatpush1.msra.mxu0 %v922
        %954 = vmatprep.subr.mxu0 0.0
        %955 = vmatpush1.msra.mxu0 %v923
        %956 = vmatprep.subr.mxu0 0.0
        %957 = vmatpush1.msra.mxu0 %v924
        %958 = vmatprep.subr.mxu0 0.0
        %959 = vmatpush1.msra.mxu0 %v925
        %960 = vmatprep.subr.mxu0 0.0
        %961 = vmatpush1.msra.mxu0 %v926
        %962 = vmatprep.subr.mxu0 0.0
        %963 = vmatpush1.msra.mxu0 %v927
        %964 = vmatprep.subr.mxu0 0.0
        %965 = vmatpush1.msra.mxu0 %v928
        %966 = vmatprep.subr.mxu0 0.0
        %967 = vmatpush1.msra.mxu0 %v929
        %968 = vmatprep.subr.mxu0 0.0
        %969 = vmatpush1.msra.mxu0 %v930
        %970 = vmatprep.subr.mxu0 0.0
        %971 = vmatpush1.msra.mxu0 0.0
        %972 = vmatprep.subr.mxu0 0.0
        %973 = vmatpush1.msra.mxu0 0.0
        %974 = vmatprep.subr.mxu0 0.0
        %975 = vmatpush1.msra.mxu0 0.0
        %976 = vmatprep.subr.mxu0 0.0
        %977 = vmatpush1.msra.mxu0 0.0
        %978 = vmatprep.subr.mxu0 0.0
        %979 = vmatpush1.msra.mxu0 0.0
        %980 = vmatprep.subr.mxu0 0.0
        %981 = vmatpush1.msra.mxu0 0.0
        %982 = vmatprep.subr.mxu0 0.0
        %983 = vmatpush1.msra.mxu0 0.0
        %984 = vmatprep.subr.mxu0 0.0
        %985 = vmatpush1.msra.mxu0 0.0
        %986 = vmatprep.subr.mxu0 0.0
        %987 = vmatpush1.msra.mxu0 0.0
        %988 = vmatprep.subr.mxu0 0.0
        %989 = vmatpush1.msra.mxu0 0.0
        %990 = vmatprep.subr.mxu0 0.0
        %991 = vmatpush1.msra.mxu0 0.0
        %992 = vmatprep.subr.mxu0 0.0
        %993 = vmatpush1.msra.mxu0 0.0
        %994 = vmatprep.subr.mxu0 0.0
        %995 = vmatpush1.msra.mxu0 0.0
        %996 = vmatprep.subr.mxu0 0.0
        %997 = vmatpush1.msra.mxu0 0.0
        %998 = vmatprep.subr.mxu0 0.0
        %999 = vmatpush1.msra.mxu0 0.0
        %1000 = vmatprep.subr.mxu0 0.0
        %1001 = vmatpush1.msra.mxu0 0.0
        %1002 = vmatprep.mubr.f32.mxu0 0.0
        %1003 = vmatmul.mubr.f32.gmra.mrb[0].mxu0 %v911
        %v1004 = vpop.f32.mrb[0].mxu0
        %v1005 = vadd.f32 %v936, %v1004
        %v1006 = vpop.f32.mrb[0].mxu0
        %1007 = vmatprep.mubr.f32.mxu0 0.0
        %1008 = vmatmul.mubr.f32.gmra.mrb[0].mxu0 %v912
        %v1009 = vpop.f32.mrb[0].mxu0
        %v1010 = vadd.f32 %v936, %v1009
        %v1011 = vpop.f32.mrb[0].mxu0
        %1012 = vmatprep.mubr.f32.mxu0 0.0
        %1013 = vmatmul.mubr.f32.gmra.mrb[0].mxu0 %v913
        %v1014 = vpop.f32.mrb[0].mxu0
        %v1015 = vadd.f32 %v936, %v1014
        %v1016 = vpop.f32.mrb[0].mxu0
        %1017 = vmatprep.mubr.f32.mxu0 0.0
        %1018 = vmatmul.mubr.f32.gmra.mrb[0].mxu0 %v914
        %v1019 = vpop.f32.mrb[0].mxu0
        %v1020 = vadd.f32 %v936, %v1019
        %v1021 = vpop.f32.mrb[0].mxu0
        %1022 = vdwg.mxu0
        %v1023 = vmax.f32 %v1005, 0.0
        %v1024 = vmax.f32 %v1010, 0.0
        %v1025 = vmax.f32 %v1015, 0.0
        %v1026 = vmax.f32 %v1020, 0.0
        %v1027 = vld [vmem:[#allocation13] sm:$0xff]
        %v1028 = vld [vmem:[#allocation13 + $0x8] sm:$0xff]
        %v1029 = vld [vmem:[#allocation13 + $0x10] sm:$0xff]
        %v1030 = vld [vmem:[#allocation13 + $0x18] sm:$0xff]
        %v1031 = vld [vmem:[#allocation13 + $0x20] sm:$0xff]
        %v1032 = vld [vmem:[#allocation13 + $0x28] sm:$0xff]
        %v1033 = vld [vmem:[#allocation13 + $0x30] sm:$0xff]
        %v1034 = vld [vmem:[#allocation13 + $0x38] sm:$0xff]
        %v1035 = vld [vmem:[#allocation13 + $0x40] sm:$0xff]
        %v1036 = vld [vmem:[#allocation13 + $0x48] sm:$0xff]
        %v1037 = vld [vmem:[#allocation13 + $0x50] sm:$0xff]
        %v1038 = vld [vmem:[#allocation13 + $0x58] sm:$0xff]
        %v1039 = vld [vmem:[#allocation13 + $0x60] sm:$0xff]
        %v1040 = vld [vmem:[#allocation13 + $0x68] sm:$0xff]
        %v1041 = vld [vmem:[#allocation13 + $0x70] sm:$0xff]
        %v1042 = vld [vmem:[#allocation13 + $0x78] sm:$0xff]
        %v1043 = vld [vmem:[%s9] sm:$0x1]
        %v1045 = vlaneseq
        %v1046 = vshrl.u32 %v1045, 7
        %v1047 = vsub.s32 0, %v1046
        %v1048 = vrot.slane %v1043, %v1047
        %1050 = vmatprep.subr.mxu0 0.0
        %1051 = vmatpush1.msra.mxu0 %v1027
        %1052 = vmatprep.subr.mxu0 0.0
        %1053 = vmatpush1.msra.mxu0 %v1028
        %1054 = vmatprep.subr.mxu0 0.0
        %1055 = vmatpush1.msra.mxu0 %v1029
        %1056 = vmatprep.subr.mxu0 0.0
        %1057 = vmatpush1.msra.mxu0 %v1030
        %1058 = vmatprep.subr.mxu0 0.0
        %1059 = vmatpush1.msra.mxu0 %v1031
        %1060 = vmatprep.subr.mxu0 0.0
        %1061 = vmatpush1.msra.mxu0 %v1032
        %1062 = vmatprep.subr.mxu0 0.0
        %1063 = vmatpush1.msra.mxu0 %v1033
        %1064 = vmatprep.subr.mxu0 0.0
        %1065 = vmatpush1.msra.mxu0 %v1034
        %1066 = vmatprep.subr.mxu0 0.0
        %1067 = vmatpush1.msra.mxu0 %v1035
        %1068 = vmatprep.subr.mxu0 0.0
        %1069 = vmatpush1.msra.mxu0 %v1036
        %1070 = vmatprep.subr.mxu0 0.0
        %1071 = vmatpush1.msra.mxu0 %v1037
        %1072 = vmatprep.subr.mxu0 0.0
        %1073 = vmatpush1.msra.mxu0 %v1038
        %1074 = vmatprep.subr.mxu0 0.0
        %1075 = vmatpush1.msra.mxu0 %v1039
        %1076 = vmatprep.subr.mxu0 0.0
        %1077 = vmatpush1.msra.mxu0 %v1040
        %1078 = vmatprep.subr.mxu0 0.0
        %1079 = vmatpush1.msra.mxu0 %v1041
        %1080 = vmatprep.subr.mxu0 0.0
        %1081 = vmatpush1.msra.mxu0 %v1042
        %1082 = vmatprep.subr.mxu0 0.0
        %1083 = vmatpush1.msra.mxu0 0.0
        %1084 = vmatprep.subr.mxu0 0.0
        %1085 = vmatpush1.msra.mxu0 0.0
        %1086 = vmatprep.subr.mxu0 0.0
        %1087 = vmatpush1.msra.mxu0 0.0
        %1088 = vmatprep.subr.mxu0 0.0
        %1089 = vmatpush1.msra.mxu0 0.0
        %1090 = vmatprep.subr.mxu0 0.0
        %1091 = vmatpush1.msra.mxu0 0.0
        %1092 = vmatprep.subr.mxu0 0.0
        %1093 = vmatpush1.msra.mxu0 0.0
        %1094 = vmatprep.subr.mxu0 0.0
        %1095 = vmatpush1.msra.mxu0 0.0
        %1096 = vmatprep.subr.mxu0 0.0
        %1097 = vmatpush1.msra.mxu0 0.0
        %1098 = vmatprep.subr.mxu0 0.0
        %1099 = vmatpush1.msra.mxu0 0.0
        %1100 = vmatprep.subr.mxu0 0.0
        %1101 = vmatpush1.msra.mxu0 0.0
        %1102 = vmatprep.subr.mxu0 0.0
        %1103 = vmatpush1.msra.mxu0 0.0
        %1104 = vmatprep.subr.mxu0 0.0
        %1105 = vmatpush1.msra.mxu0 0.0
        %1106 = vmatprep.subr.mxu0 0.0
        %1107 = vmatpush1.msra.mxu0 0.0
        %1108 = vmatprep.subr.mxu0 0.0
        %1109 = vmatpush1.msra.mxu0 0.0
        %1110 = vmatprep.subr.mxu0 0.0
        %1111 = vmatpush1.msra.mxu0 0.0
        %1112 = vmatprep.subr.mxu0 0.0
        %1113 = vmatpush1.msra.mxu0 0.0
        %1114 = vmatprep.mubr.f32.mxu0 0.0
        %1115 = vmatmul.mubr.f32.gmra.mrb[0].mxu0 %v1023
        %v1116 = vpop.f32.mrb[0].mxu0
        %v1117 = vadd.f32 %v1048, %v1116
        %v1118 = vpop.f32.mrb[0].mxu0
        %1119 = vmatprep.mubr.f32.mxu0 0.0
        %1120 = vmatmul.mubr.f32.gmra.mrb[0].mxu0 %v1024
        %v1121 = vpop.f32.mrb[0].mxu0
        %v1122 = vadd.f32 %v1048, %v1121
        %v1123 = vpop.f32.mrb[0].mxu0
        %1124 = vmatprep.mubr.f32.mxu0 0.0
        %1125 = vmatmul.mubr.f32.gmra.mrb[0].mxu0 %v1025
        %v1126 = vpop.f32.mrb[0].mxu0
        %v1127 = vadd.f32 %v1048, %v1126
        %v1128 = vpop.f32.mrb[0].mxu0
        %1129 = vmatprep.mubr.f32.mxu0 0.0
        %1130 = vmatmul.mubr.f32.gmra.mrb[0].mxu0 %v1026
        %v1131 = vpop.f32.mrb[0].mxu0
        %v1132 = vadd.f32 %v1048, %v1131
        %v1133 = vpop.f32.mrb[0].mxu0
        %1134 = vdwg.mxu0
        %v1135 = vadd.f32 %v1117, %v478
        %v1136 = vadd.f32 %v1122, %v479
        %v1137 = vadd.f32 %v1127, %v480
        %v1138 = vadd.f32 %v1132, %v481
        %1139 = vst [vmem:[%s474] sm:$0xff] %v1135
        %1140 = vst [vmem:[%s474 + $0x8] sm:$0xff] %v1136
        %1141 = vst [vmem:[%s474 + $0x10] sm:$0xff] %v1137
        %1142 = vst [vmem:[%s474 + $0x18] sm:$0xff] %v1138
        %s1143 = sand.u32 %s260, 1
        %s1144 = scalar_lea.sflag [#allocation6], %s1143
        %s1145 = sand.u32 %s260, 1
        %s1146 = smul.addr %s1145, 32
        %s1147 = scalar_lea.vmem [#allocation15], %s1146
        // Predicated region
        $region81: #{tpu_custom_call.1} parent=55 // pred_check
          %p1148 = pneg %p270
        $region82: #{tpu_custom_call.1} parent=55 // pred_check_branch
          %1150 = sbr.rel (%p1148) target = $region84
        $region83: #{tpu_custom_call.1} parent=55 // pred_region
          #allocation17 [shape = 'u32[6]{0}', space=smem, size = 0x18, scoped, tag = 'DMA stride descriptor']
          %s1151 = smul.u32 2, %s39
          %s1153 = ssub.s32 512, 512
          %1154 = vsyncadd %s1144, %s1153
          %s1155 = smul.addr %s38, 2
          %s1156 = smul.addr %s1151, 6
          %s1157 = sadd.s32 %s1155, %s1156
          %s1158 = smul.addr %s1157, 128
          %s1159 = scalar_lea.hbm %s10, %s1158
          %s1161 = sshll.u32 1, 14
          %s1162 = sxor.u32 4294967295, %s1161
          %s1165 = sshll.u32 7, 18
          %s1166 = sxor.u32 4294967295, %s1165
          %s1167 = sand.u32 0, %s1166
          %s1169 = sor.u32 %s1167, 0
          %s1171 = sshll.u32 3, 24
          %s1172 = sxor.u32 4294967295, %s1171
          %s1173 = sand.u32 %s1169, %s1172
          %s1175 = sor.u32 %s1173, 0
          %s1176 = sshll.u32 %s1147, 4
          %s1177 = int_to_ptr.vmem [resolvable:$true] %s1176
          %1183 = sst [smem:[#allocation17]] 256
          %s1184 = scalar_lea.smem [#allocation17], 1
          %1185 = sst [smem:[%s1184]] 768
          %s1186 = scalar_lea.smem [#allocation17], 2
          %1187 = sst [smem:[%s1186]] 2
          %s1188 = scalar_lea.smem [#allocation17], 3
          %1189 = sst [smem:[%s1188]] 128
          %s1190 = scalar_lea.smem [#allocation17], 4
          %1191 = sst [smem:[%s1190]] 128
          %s1192 = scalar_lea.smem [#allocation17], 5
          %1193 = sst [smem:[%s1192]] 8
          %1195 = dma.general %s1177, 512, %s1159, %s1144, [#allocation16], [#allocation17], %s1175, 0
        $region84: #{tpu_custom_call.1} parent=55 // pred_fallthru
          _
      $region56: #{tpu_custom_call.1} parent=5 // pred_fallthru
        _
      %p1196 = scmp.le.s32.totalorder 2, %s29
      // Predicated region
      $region85: #{tpu_custom_call.1} parent=5 // pred_check
        %p1197 = pneg %p1196
      $region86: #{tpu_custom_call.1} parent=5 // pred_check_branch
        %1199 = sbr.rel (%p1197) target = $region88
      $region87: #{tpu_custom_call.1} parent=5 // pred_region
        %s1200 = ssub.s32 %s29, 2
        // Predicated region
        $region89: #{tpu_custom_call.1} parent=87 // pred_check
          %p1201 = pneg %p276
        $region90: #{tpu_custom_call.1} parent=87 // pred_check_branch
          %1203 = sbr.rel (%p1201) target = $region92
        $region91: #{tpu_custom_call.1} parent=87 // pred_region
          %s1204 = sand.u32 %s261, 1
          %s1205 = scalar_lea.sflag [#allocation6], %s1204
          %s1206 = sand.u32 %s261, 1
          %s1207 = smul.addr %s1206, 32
          %s1208 = scalar_lea.vmem [#allocation15], %s1207
          %1209 = dma.done %s1205, 512
        $region92: #{tpu_custom_call.1} parent=87 // pred_fallthru
          _
      $region88: #{tpu_custom_call.1} parent=5 // pred_fallthru
        _
    $region6: #{tpu_custom_call.1} parent=1 // loop_footer
      %s33 = sadd.s32 1, %s29
    $region7: #{tpu_custom_call.1} parent=1 // loop_footer_branch
      %28 = sbr.rel target = $region3
    $region8: #{tpu_custom_call.1} parent=1 // loop_exit
      _
    %1210 = vsyncpa [#allocation5], 1
    %s1211 = scalar_lea.sflag [#allocation5], 1
    %1212 = vsyncpa %s1211, 1
    %1213 = vsyncpa [#allocation8], 1
    %s1214 = scalar_lea.sflag [#allocation8], 1
    %1215 = vsyncpa %s1214, 1
    %1216 = vsyncpa [#allocation11], 1
    %1217 = vsyncpa [#allocation14], 1
    %1218 = vsyncpa [#allocation6], 1
    %s1219 = scalar_lea.sflag [#allocation6], 1
    %1220 = vsyncpa %s1219, 1

// kernel: tpu_custom_call.1
$region0: #{tpu_custom_call.1}
  #allocation0 [shape = 'u32[]', space=smem, size = 0x4, offset = 0x4, fixed_abs, tag = 'smem constant byte address 0x4 - core index']
  #allocation1 [shape = 'u32[144,128]{1,0:T(1,128)}', space=vmem, size = 0x12000, scoped, tag = 'internal scratch']
  #allocation2 [shape = 's32[1]{0}', space=sflag, size = 0x4, scoped, tag = 'scoped memory for tpu_custom_call.1']
  #allocation3 [shape = 'u8[512]{0}', space=smem, size = 0x200, scoped, tag = 'prefetched SMEM operand 0']
  #allocation16 [shape = 's32[]', space=sflag, size = 0x4, offset = 0, fixed_abs, tag = 'sflag constant byte address 0x0 - dummy sync flag']
  %s0 = inlined_call_operand.hbm [shape: s32[3], index: 0, kind: input, shape index: {}]
  %s1 = inlined_call_operand.hbm [shape: f32[2,16,128], index: 1, kind: input, shape index: {}]
  %s2 = inlined_call_operand.hbm [shape: f32[3,128,128], index: 2, kind: input, shape index: {}]
  %s3 = inlined_call_operand.hbm [shape: f32[3,128,128], index: 3, kind: input, shape index: {}]
  %s4 = inlined_call_operand.hbm [shape: f32[128,256], index: 4, kind: input, shape index: {}]
  %s5 = inlined_call_operand.vmem [shape: f32[1,256], index: 5, kind: input, shape index: {}]
  %s6 = inlined_call_operand.hbm [shape: f32[128,128], index: 6, kind: input, shape index: {}]
  %s7 = inlined_call_operand.vmem [shape: f32[1,128], index: 7, kind: input, shape index: {}]
  %s8 = inlined_call_operand.hbm [shape: f32[128,128], index: 8, kind: input, shape index: {}]
  %s9 = inlined_call_operand.vmem [shape: f32[1,128], index: 9, kind: input, shape index: {}]
  %s10 = inlined_call_operand.hbm [shape: f32[2,3,16,128], index: 10, kind: output, shape index: {}]
  %s11 = sld [smem:[#allocation0]]
  $region93: #{tpu_custom_call.1} parent=0
    _
  %s13 = ssub.s32 1, %s11
  %s14 = scalar_select 0, %s13, %s11
  %16 = dma.hbm_to_smem %s0, 16, [#allocation3], [#allocation2]
  %17 = dma.done [#allocation2], 16
  %18 = sfence
  $region1: #{tpu_custom_call.1} parent=0
    #allocation4 [shape = 'u8[16384]{0}', space=vmem, size = 0x4000, scoped, tag = 'input window, operand 1, single buffered']
    #allocation5 [shape = 's32[2]{0}', space=sflag, size = 0x8, scoped, tag = 'scoped memory for tpu_custom_call.1']
    #allocation6 [shape = 's32[2]{0}', space=sflag, size = 0x8, scoped, tag = 'scoped memory for tpu_custom_call.1']
    #allocation7 [shape = 'u8[131072]{0}', space=vmem, size = 0x20000, scoped, tag = 'input window, operand 2']
    #allocation8 [shape = 's32[2]{0}', space=sflag, size = 0x8, scoped, tag = 'scoped memory for tpu_custom_call.1']
    #allocation9 [shape = 'u8[131072]{0}', space=vmem, size = 0x20000, scoped, tag = 'input window, operand 3']
    #allocation10 [shape = 'u8[131072]{0}', space=vmem, size = 0x20000, scoped, tag = 'input window, operand 4, single buffered']
    #allocation11 [shape = 's32[1]{0}', space=sflag, size = 0x4, scoped, tag = 'scoped memory for tpu_custom_call.1']
    #allocation12 [shape = 'u8[65536]{0}', space=vmem, size = 0x10000, scoped, tag = 'input window, operand 6, single buffered']
    #allocation13 [shape = 'u8[65536]{0}', space=vmem, size = 0x10000, scoped, tag = 'input window, operand 8, single buffered']
    #allocation14 [shape = 's32[1]{0}', space=sflag, size = 0x4, scoped, tag = 'scoped memory for tpu_custom_call.1']
    #allocation15 [shape = 'u8[32768]{0}', space=vmem, size = 0x8000, scoped, tag = 'output window, operand 0']
    %19 = vsyncpa [#allocation5], 0
    %20 = vsyncpa [#allocation8], 0
    %s21 = scalar_lea.sflag [#allocation8], 1
    %22 = vsyncpa %s21, 0
    %23 = vsyncpa [#allocation11], 0
    %24 = vsyncpa [#allocation14], 0
    %25 = vsyncpa [#allocation6], 0
    %s26 = scalar_lea.sflag [#allocation6], 1
    %27 = vsyncpa %s26, 0
    loop: start=0, step=1, limit=5
    $region2: #{tpu_custom_call.1} parent=1 // loop_pre_header
      _
    $region3: #{tpu_custom_call.1} parent=1 // loop_header
      %s29 = sphi 0, %s33
      %p30 = scmp.ge.s32.totalorder %s29, 5
      %s36 = sphi 0, %s48
      %s37 = sphi 0, %s44
      %s38 = sphi 0, %s36
      %s39 = sphi 0, %s37
      %s40 = sphi 0, %s38
      %s41 = sphi 0, %s39
      %s51 = sphi 0, %s53
      %s54 = sphi 0, %s51
      %s55 = sphi 0, %s54
      %s71 = sphi 0, %s55
      %s77 = sphi 0, %s79
      %s80 = sphi 0, %s77
      %s81 = sphi 0, %s80
      %s97 = sphi 0, %s81
      %s103 = sphi 0, %s105
      %s106 = sphi 0, %s103
      %s107 = sphi 0, %s106
      %s123 = sphi 0, %s107
      %s127 = sphi 0, %s127
      %s129 = sphi 0, %s127
      %s130 = sphi 0, %s129
      %s144 = sphi 0, %s130
      %s148 = sphi 0, %s148
      %s150 = sphi 0, %s148
      %s151 = sphi 0, %s150
      %s165 = sphi 0, %s151
      %s169 = sphi 0, %s169
      %s171 = sphi 0, %s169
      %s172 = sphi 0, %s171
      %s186 = sphi 0, %s172
      %s190 = sphi 0, %s190
      %s192 = sphi 0, %s190
      %s193 = sphi 0, %s192
      %s207 = sphi 0, %s193
      %s211 = sphi 0, %s211
      %s213 = sphi 0, %s211
      %s214 = sphi 0, %s213
      %s228 = sphi 0, %s214
      %s232 = sphi 0, %s232
      %s234 = sphi 0, %s232
      %s235 = sphi 0, %s234
      %s249 = sphi 0, %s235
      %s257 = sphi 0, %s259
      %s260 = sphi 0, %s257
      %s261 = sphi 0, %s260
      %s277 = sphi 0, %s261
    $region4: #{tpu_custom_call.1} parent=1 // loop_header_branch
      %32 = sbr.rel (%p30) target = $region8
    $region5: #{tpu_custom_call.1} parent=1 // loop_body
      %s34 = ssub.s32 %s29, 1
      %s35 = ssub.s32 %s29, 2
      %s42 = sadd.s32 1, %s37
      %p43 = scmp.ge.s32.totalorder %s42, 1
      %s44 = scalar_select %p43, 0, %s42
      %s45 = sadd.s32 1, %s36
      %s46 = scalar_select %p43, %s45, %s36
      %p47 = scmp.ge.s32.totalorder %s46, 3
      %s48 = scalar_select %p47, 0, %s46
      %s49 = ssub.s32 %s37, %s44
      %p50 = scmp.eq.s32.totalorder %s49, 0
      %s52 = sadd.s32 %s51, 1
      %s53 = scalar_select %p50, %s51, %s52
      %p56 = pneg %p50
      %p57 = scmp.eq.s32.totalorder %s29, 2
      %p58 = por %p56, %p57
      %p59 = scmp.ne.s32.totalorder %s51, %s54
      %p60 = scmp.eq.s32.totalorder %s29, 0
      %p61 = por %p59, %p60
      %p62 = scmp.ne.s32.totalorder %s51, %s54
      %p63 = scmp.eq.s32.totalorder %s34, 2
      %p64 = por %p62, %p63
      %p65 = scmp.ne.s32.totalorder %s54, %s55
      %p66 = scmp.eq.s32.totalorder %s34, 0
      %p67 = por %p65, %p66
      %p68 = scmp.ne.s32.totalorder %s54, %s55
      %p69 = scmp.eq.s32.totalorder %s35, 2
      %p70 = por %p68, %p69
      %p72 = scmp.ne.s32.totalorder %s55, %s71
      %p73 = scmp.eq.s32.totalorder %s35, 0
      %p74 = por %p72, %p73
      %s75 = ssub.s32 %s36, %s48
      %p76 = scmp.eq.s32.totalorder %s75, 0
      %s78 = sadd.s32 %s77, 1
      %s79 = scalar_select %p76, %s77, %s78
      %p82 = pneg %p76
      %p83 = scmp.eq.s32.totalorder %s29, 2
      %p84 = por %p82, %p83
      %p85 = scmp.ne.s32.totalorder %s77, %s80
      %p86 = scmp.eq.s32.totalorder %s29, 0
      %p87 = por %p85, %p86
      %p88 = scmp.ne.s32.totalorder %s77, %s80
      %p89 = scmp.eq.s32.totalorder %s34, 2
      %p90 = por %p88, %p89
      %p91 = scmp.ne.s32.totalorder %s80, %s81
      %p92 = scmp.eq.s32.totalorder %s34, 0
      %p93 = por %p91, %p92
      %p94 = scmp.ne.s32.totalorder %s80, %s81
      %p95 = scmp.eq.s32.totalorder %s35, 2
      %p96 = por %p94, %p95
      %p98 = scmp.ne.s32.totalorder %s81, %s97
      %p99 = scmp.eq.s32.totalorder %s35, 0
      %p100 = por %p98, %p99
      %s101 = ssub.s32 %s36, %s48
      %p102 = scmp.eq.s32.totalorder %s101, 0
      %s104 = sadd.s32 %s103, 1
      %s105 = scalar_select %p102, %s103, %s104
      %p108 = pneg %p102
      %p109 = scmp.eq.s32.totalorder %s29, 2
      %p110 = por %p108, %p109
      %p111 = scmp.ne.s32.totalorder %s103, %s106
      %p112 = scmp.eq.s32.totalorder %s29, 0
      %p113 = por %p111, %p112
      %p114 = scmp.ne.s32.totalorder %s103, %s106
      %p115 = scmp.eq.s32.totalorder %s34, 2
      %p116 = por %p114, %p115
      %p117 = scmp.ne.s32.totalorder %s106, %s107
      %p118 = scmp.eq.s32.totalorder %s34, 0
      %p119 = por %p117, %p118
      %p120 = scmp.ne.s32.totalorder %s106, %s107
      %p121 = scmp.eq.s32.totalorder %s35, 2
      %p122 = por %p120, %p121
      %p124 = scmp.ne.s32.totalorder %s107, %s123
      %p125 = scmp.eq.s32.totalorder %s35, 0
      %p126 = por %p124, %p125
      %s128 = sadd.s32 %s127, 1
      %p131 = scmp.eq.s32.totalorder %s29, 2
      %p132 = scmp.ne.s32.totalorder %s127, %s129
      %p133 = scmp.eq.s32.totalorder %s29, 0
      %p134 = por %p132, %p133
      %p135 = scmp.ne.s32.totalorder %s127, %s129
      %p136 = scmp.eq.s32.totalorder %s34, 2
      %p137 = por %p135, %p136
      %p138 = scmp.ne.s32.totalorder %s129, %s130
      %p139 = scmp.eq.s32.totalorder %s34, 0
      %p140 = por %p138, %p139
      %p141 = scmp.ne.s32.totalorder %s129, %s130
      %p142 = scmp.eq.s32.totalorder %s35, 2
      %p143 = por %p141, %p142
      %p145 = scmp.ne.s32.totalorder %s130, %s144
      %p146 = scmp.eq.s32.totalorder %s35, 0
      %p147 = por %p145, %p146
      %s149 = sadd.s32 %s148, 1
      %p152 = scmp.eq.s32.totalorder %s29, 2
      %p153 = scmp.ne.s32.totalorder %s148, %s150
      %p154 = scmp.eq.s32.totalorder %s29, 0
      %p155 = por %p153, %p154
      %p156 = scmp.ne.s32.totalorder %s148, %s150
      %p157 = scmp.eq.s32.totalorder %s34, 2
      %p158 = por %p156, %p157
      %p159 = scmp.ne.s32.totalorder %s150, %s151
      %p160 = scmp.eq.s32.totalorder %s34, 0
      %p161 = por %p159, %p160
      %p162 = scmp.ne.s32.totalorder %s150, %s151
      %p163 = scmp.eq.s32.totalorder %s35, 2
      %p164 = por %p162, %p163
      %p166 = scmp.ne.s32.totalorder %s151, %s165
      %p167 = scmp.eq.s32.totalorder %s35, 0
      %p168 = por %p166, %p167
      %s170 = sadd.s32 %s169, 1
      %p173 = scmp.eq.s32.totalorder %s29, 2
      %p174 = scmp.ne.s32.totalorder %s169, %s171
      %p175 = scmp.eq.s32.totalorder %s29, 0
      %p176 = por %p174, %p175
      %p177 = scmp.ne.s32.totalorder %s169, %s171
      %p178 = scmp.eq.s32.totalorder %s34, 2
      %p179 = por %p177, %p178
      %p180 = scmp.ne.s32.totalorder %s171, %s172
      %p181 = scmp.eq.s32.totalorder %s34, 0
      %p182 = por %p180, %p181
      %p183 = scmp.ne.s32.totalorder %s171, %s172
      %p184 = scmp.eq.s32.totalorder %s35, 2
      %p185 = por %p183, %p184
      %p187 = scmp.ne.s32.totalorder %s172, %s186
      %p188 = scmp.eq.s32.totalorder %s35, 0
      %p189 = por %p187, %p188
      %s191 = sadd.s32 %s190, 1
      %p194 = scmp.eq.s32.totalorder %s29, 2
      %p195 = scmp.ne.s32.totalorder %s190, %s192
      %p196 = scmp.eq.s32.totalorder %s29, 0
      %p197 = por %p195, %p196
      %p198 = scmp.ne.s32.totalorder %s190, %s192
      %p199 = scmp.eq.s32.totalorder %s34, 2
      %p200 = por %p198, %p199
      %p201 = scmp.ne.s32.totalorder %s192, %s193
      %p202 = scmp.eq.s32.totalorder %s34, 0
      %p203 = por %p201, %p202
      %p204 = scmp.ne.s32.totalorder %s192, %s193
      %p205 = scmp.eq.s32.totalorder %s35, 2
      %p206 = por %p204, %p205
      %p208 = scmp.ne.s32.totalorder %s193, %s207
      %p209 = scmp.eq.s32.totalorder %s35, 0
      %p210 = por %p208, %p209
      %s212 = sadd.s32 %s211, 1
      %p215 = scmp.eq.s32.totalorder %s29, 2
      %p216 = scmp.ne.s32.totalorder %s211, %s213
      %p217 = scmp.eq.s32.totalorder %s29, 0
      %p218 = por %p216, %p217
      %p219 = scmp.ne.s32.totalorder %s211, %s213
      %p220 = scmp.eq.s32.totalorder %s34, 2
      %p221 = por %p219, %p220
      %p222 = scmp.ne.s32.totalorder %s213, %s214
      %p223 = scmp.eq.s32.totalorder %s34, 0
      %p224 = por %p222, %p223
      %p225 = scmp.ne.s32.totalorder %s213, %s214
      %p226 = scmp.eq.s32.totalorder %s35, 2
      %p227 = por %p225, %p226
      %p229 = scmp.ne.s32.totalorder %s214, %s228
      %p230 = scmp.eq.s32.totalorder %s35, 0
      %p231 = por %p229, %p230
      %s233 = sadd.s32 %s232, 1
      %p236 = scmp.eq.s32.totalorder %s29, 2
      %p237 = scmp.ne.s32.totalorder %s232, %s234
      %p238 = scmp.eq.s32.totalorder %s29, 0
      %p239 = por %p237, %p238
      %p240 = scmp.ne.s32.totalorder %s232, %s234
      %p241 = scmp.eq.s32.totalorder %s34, 2
      %p242 = por %p240, %p241
      %p243 = scmp.ne.s32.totalorder %s234, %s235
      %p244 = scmp.eq.s32.totalorder %s34, 0
      %p245 = por %p243, %p244
      %p246 = scmp.ne.s32.totalorder %s234, %s235
      %p247 = scmp.eq.s32.totalorder %s35, 2
      %p248 = por %p246, %p247
      %p250 = scmp.ne.s32.totalorder %s235, %s249
      %p251 = scmp.eq.s32.totalorder %s35, 0
      %p252 = por %p250, %p251
      %s253 = ssub.s32 %s37, %s44
      %s254 = ssub.s32 %s36, %s48
      %s255 = sor.u32 %s253, %s254
      %p256 = scmp.eq.s32.totalorder %s255, 0
      %s258 = sadd.s32 %s257, 1
      %s259 = scalar_select %p256, %s257, %s258
      %p262 = pneg %p256
      %p263 = scmp.eq.s32.totalorder %s29, 2
      %p264 = por %p262, %p263
      %p265 = scmp.ne.s32.totalorder %s257, %s260
      %p266 = scmp.eq.s32.totalorder %s29, 0
      %p267 = por %p265, %p266
      %p268 = scmp.ne.s32.totalorder %s257, %s260
      %p269 = scmp.eq.s32.totalorder %s34, 2
      %p270 = por %p268, %p269
      %p271 = scmp.ne.s32.totalorder %s260, %s261
      %p272 = scmp.eq.s32.totalorder %s34, 0
      %p273 = por %p271, %p272
      %p274 = scmp.ne.s32.totalorder %s260, %s261
      %p275 = scmp.eq.s32.totalorder %s35, 2
      %p276 = por %p274, %p275
      %p278 = scmp.ne.s32.totalorder %s261, %s277
      %p279 = scmp.eq.s32.totalorder %s35, 0
      %p280 = por %p278, %p279
      %p281 = scmp.le.s32.totalorder 1, %s29
      %p282 = scmp.lt.s32.totalorder %s29, 4
      %p283 = pnand %p281, %p282
      %p284 = pneg %p283
      // Predicated region
      $region9: #{tpu_custom_call.1} parent=5 // pred_check
        _
      $region10: #{tpu_custom_call.1} parent=5 // pred_check_branch
        %286 = sbr.rel (%p283) target = $region12
      $region11: #{tpu_custom_call.1} parent=5 // pred_region
        %s287 = ssub.s32 %s29, 1
        // Predicated region
        $region13: #{tpu_custom_call.1} parent=11 // pred_check
          %p288 = pneg %p67
        $region14: #{tpu_custom_call.1} parent=11 // pred_check_branch
          %290 = sbr.rel (%p288) target = $region16
        $region15: #{tpu_custom_call.1} parent=11 // pred_region
          %s291 = smul.u32 2, %s39
          %s293 = ssub.s32 512, 512
          %294 = vsyncadd [#allocation5], %s293
          %s295 = smul.addr %s291, 2
          %s296 = smul.addr %s295, 128
          %s297 = scalar_lea.hbm %s1, %s296
          %s298 = sshll.u32 [#allocation4], 4
          %s299 = int_to_ptr.vmem [resolvable:$true] %s298
          %304 = dma.hbm_to_vmem [thread:$0]  %s297, 512, %s299, [#allocation5], 128, 128, 8
        $region16: #{tpu_custom_call.1} parent=11 // pred_fallthru
          _
        // Predicated region
        $region17: #{tpu_custom_call.1} parent=11 // pred_check
          %p305 = pneg %p140
        $region18: #{tpu_custom_call.1} parent=11 // pred_check_branch
          %307 = sbr.rel (%p305) target = $region20
        $region19: #{tpu_custom_call.1} parent=11 // pred_region
          %s309 = ssub.s32 4096, 4096
          %310 = vsyncadd [#allocation11], %s309
          %s311 = sshll.u32 [#allocation10], 4
          %s312 = int_to_ptr.vmem [resolvable:$true] %s311
          %317 = dma.hbm_to_vmem [thread:$0]  %s4, 4096, %s312, [#allocation11], 256, 256, 16
        $region20: #{tpu_custom_call.1} parent=11 // pred_fallthru
          _
        // Predicated region
        $region21: #{tpu_custom_call.1} parent=11 // pred_check
          %p318 = pneg %p161
        $region22: #{tpu_custom_call.1} parent=11 // pred_check_branch
          %320 = sbr.rel (%p318) target = $region24
        $region23: #{tpu_custom_call.1} parent=11 // pred_region
          _
        $region24: #{tpu_custom_call.1} parent=11 // pred_fallthru
          _
        // Predicated region
        $region25: #{tpu_custom_call.1} parent=11 // pred_check
          %p321 = pneg %p182
        $region26: #{tpu_custom_call.1} parent=11 // pred_check_branch
          %323 = sbr.rel (%p321) target = $region28
        $region27: #{tpu_custom_call.1} parent=11 // pred_region
          %s325 = ssub.s32 2048, 2048
          %326 = vsyncadd [#allocation11], %s325
          %s327 = sshll.u32 [#allocation12], 4
          %s328 = int_to_ptr.vmem [resolvable:$true] %s327
          %333 = dma.hbm_to_vmem [thread:$0]  %s6, 2048, %s328, [#allocation11], 128, 128, 8
        $region28: #{tpu_custom_call.1} parent=11 // pred_fallthru
          _
        // Predicated region
        $region29: #{tpu_custom_call.1} parent=11 // pred_check
          %p334 = pneg %p203
        $region30: #{tpu_custom_call.1} parent=11 // pred_check_branch
          %336 = sbr.rel (%p334) target = $region32
        $region31: #{tpu_custom_call.1} parent=11 // pred_region
          _
        $region32: #{tpu_custom_call.1} parent=11 // pred_fallthru
          _
        // Predicated region
        $region33: #{tpu_custom_call.1} parent=11 // pred_check
          %p337 = pneg %p224
        $region34: #{tpu_custom_call.1} parent=11 // pred_check_branch
          %339 = sbr.rel (%p337) target = $region36
        $region35: #{tpu_custom_call.1} parent=11 // pred_region
          %s341 = ssub.s32 2048, 2048
          %342 = vsyncadd [#allocation14], %s341
          %s343 = sshll.u32 [#allocation13], 4
          %s344 = int_to_ptr.vmem [resolvable:$true] %s343
          %349 = dma.hbm_to_vmem [thread:$0]  %s8, 2048, %s344, [#allocation14], 128, 128, 8
        $region36: #{tpu_custom_call.1} parent=11 // pred_fallthru
          _
        // Predicated region
        $region37: #{tpu_custom_call.1} parent=11 // pred_check
          %p350 = pneg %p245
        $region38: #{tpu_custom_call.1} parent=11 // pred_check_branch
          %352 = sbr.rel (%p350) target = $region40
        $region39: #{tpu_custom_call.1} parent=11 // pred_region
          _
        $region40: #{tpu_custom_call.1} parent=11 // pred_fallthru
          _
      $region12: #{tpu_custom_call.1} parent=5 // pred_fallthru
        _
      %p353 = scmp.lt.s32.totalorder %s29, 3
      // Predicated region
      $region41: #{tpu_custom_call.1} parent=5 // pred_check
        %p354 = pneg %p353
      $region42: #{tpu_custom_call.1} parent=5 // pred_check_branch
        %356 = sbr.rel (%p354) target = $region44
      $region43: #{tpu_custom_call.1} parent=5 // pred_region
        // Predicated region
        $region45: #{tpu_custom_call.1} parent=43 // pred_check
          %p357 = pneg %p87
        $region46: #{tpu_custom_call.1} parent=43 // pred_check_branch
          %359 = sbr.rel (%p357) target = $region48
        $region47: #{tpu_custom_call.1} parent=43 // pred_region
          %s360 = sand.u32 %s29, 1
          %s361 = scalar_lea.sflag [#allocation8], %s360
          %s362 = sand.u32 %s77, 1
          %s363 = smul.addr %s362, 128
          %s364 = scalar_lea.vmem [#allocation7], %s363
          %s366 = ssub.s32 2048, 2048
          %367 = vsyncadd %s361, %s366
          %s368 = smul.addr %s36, 16
          %s369 = smul.addr %s368, 128
          %s370 = scalar_lea.hbm %s2, %s369
          %s371 = sshll.u32 %s364, 4
          %s372 = int_to_ptr.vmem [resolvable:$true] %s371
          %377 = dma.hbm_to_vmem [thread:$0]  %s370, 2048, %s372, %s361, 128, 128, 8
        $region48: #{tpu_custom_call.1} parent=43 // pred_fallthru
          _
        // Predicated region
        $region49: #{tpu_custom_call.1} parent=43 // pred_check
          %p378 = pneg %p113
        $region50: #{tpu_custom_call.1} parent=43 // pred_check_branch
          %380 = sbr.rel (%p378) target = $region52
        $region51: #{tpu_custom_call.1} parent=43 // pred_region
          %s381 = sand.u32 %s29, 1
          %s382 = scalar_lea.sflag [#allocation8], %s381
          %s383 = sand.u32 %s103, 1
          %s384 = smul.addr %s383, 128
          %s385 = scalar_lea.vmem [#allocation9], %s384
          %s387 = ssub.s32 2048, 2048
          %388 = vsyncadd %s382, %s387
          %s389 = smul.addr %s36, 16
          %s390 = smul.addr %s389, 128
          %s391 = scalar_lea.hbm %s3, %s390
          %s392 = sshll.u32 %s385, 4
          %s393 = int_to_ptr.vmem [resolvable:$true] %s392
          %398 = dma.hbm_to_vmem [thread:$0]  %s391, 2048, %s393, %s382, 128, 128, 8
        $region52: #{tpu_custom_call.1} parent=43 // pred_fallthru
          _
      $region44: #{tpu_custom_call.1} parent=5 // pred_fallthru
        _
      %p399 = scmp.le.s32.totalorder 1, %s29
      %p400 = scmp.lt.s32.totalorder %s29, 4
      %p401 = pnand %p399, %p400
      %p402 = pneg %p401
      // Predicated region
      $region53: #{tpu_custom_call.1} parent=5 // pred_check
        _
      $region54: #{tpu_custom_call.1} parent=5 // pred_check_branch
        %404 = sbr.rel (%p401) target = $region56
      $region55: #{tpu_custom_call.1} parent=5 // pred_region
        %s405 = ssub.s32 %s29, 1
        // Predicated region
        $region57: #{tpu_custom_call.1} parent=55 // pred_check
          %p406 = pneg %p67
        $region58: #{tpu_custom_call.1} parent=55 // pred_check_branch
          %408 = sbr.rel (%p406) target = $region60
        $region59: #{tpu_custom_call.1} parent=55 // pred_region
          %409 = dma.done [#allocation5], 512
        $region60: #{tpu_custom_call.1} parent=55 // pred_fallthru
          _
        %s410 = sand.u32 %s34, 1
        %s411 = scalar_lea.sflag [#allocation8], %s410
        %s412 = sand.u32 %s80, 1
        %s413 = smul.addr %s412, 128
        %s414 = scalar_lea.vmem [#allocation7], %s413
        // Predicated region
        $region61: #{tpu_custom_call.1} parent=55 // pred_check
          %p415 = pneg %p93
        $region62: #{tpu_custom_call.1} parent=55 // pred_check_branch
          %417 = sbr.rel (%p415) target = $region64
        $region63: #{tpu_custom_call.1} parent=55 // pred_region
          %418 = dma.done %s411, 2048
        $region64: #{tpu_custom_call.1} parent=55 // pred_fallthru
          _
        %s419 = sand.u32 %s34, 1
        %s420 = scalar_lea.sflag [#allocation8], %s419
        %s421 = sand.u32 %s106, 1
        %s422 = smul.addr %s421, 128
        %s423 = scalar_lea.vmem [#allocation9], %s422
        // Predicated region
        $region65: #{tpu_custom_call.1} parent=55 // pred_check
          %p424 = pneg %p119
        $region66: #{tpu_custom_call.1} parent=55 // pred_check_branch
          %426 = sbr.rel (%p424) target = $region68
        $region67: #{tpu_custom_call.1} parent=55 // pred_region
          %427 = dma.done %s420, 2048
        $region68: #{tpu_custom_call.1} parent=55 // pred_fallthru
          _
        // Predicated region
        $region69: #{tpu_custom_call.1} parent=55 // pred_check
          %p428 = pneg %p140
        $region70: #{tpu_custom_call.1} parent=55 // pred_check_branch
          %430 = sbr.rel (%p428) target = $region72
        $region71: #{tpu_custom_call.1} parent=55 // pred_region
          %431 = dma.done [#allocation11], 4096
        $region72: #{tpu_custom_call.1} parent=55 // pred_fallthru
          _
        // Predicated region
        $region73: #{tpu_custom_call.1} parent=55 // pred_check
          %p432 = pneg %p182
        $region74: #{tpu_custom_call.1} parent=55 // pred_check_branch
          %434 = sbr.rel (%p432) target = $region76
        $region75: #{tpu_custom_call.1} parent=55 // pred_region
          %435 = dma.done [#allocation11], 2048
        $region76: #{tpu_custom_call.1} parent=55 // pred_fallthru
          _
        // Predicated region
        $region77: #{tpu_custom_call.1} parent=55 // pred_check
          %p436 = pneg %p224
        $region78: #{tpu_custom_call.1} parent=55 // pred_check_branch
          %438 = sbr.rel (%p436) target = $region80
        $region79: #{tpu_custom_call.1} parent=55 // pred_region
          %439 = dma.done [#allocation14], 2048
        $region80: #{tpu_custom_call.1} parent=55 // pred_fallthru
          _
        %p440 = pneg %p67
        %p441 = pneg %p64
        %s442 = sand.u32 %s34, 1
        %s443 = scalar_lea.sflag [#allocation8], %s442
        %s444 = sand.u32 %s80, 1
        %s445 = smul.addr %s444, 128
        %s446 = scalar_lea.vmem [#allocation7], %s445
        %p447 = pneg %p93
        %p448 = pneg %p90
        %s449 = sand.u32 %s34, 1
        %s450 = scalar_lea.sflag [#allocation8], %s449
        %s451 = sand.u32 %s106, 1
        %s452 = smul.addr %s451, 128
        %s453 = scalar_lea.vmem [#allocation9], %s452
        %p454 = pneg %p119
        %p455 = pneg %p116
        %p456 = pneg %p140
        %p457 = pneg %p137
        %p458 = pneg %p161
        %p459 = pneg %p158
        %p460 = pneg %p182
        %p461 = pneg %p179
        %p462 = pneg %p203
        %p463 = pneg %p200
        %p464 = pneg %p224
        %p465 = pneg %p221
        %p466 = pneg %p245
        %p467 = pneg %p242
        %p468 = pneg %p273
        %p469 = pneg %p270
        %s470 = sand.u32 %s260, 1
        %s471 = scalar_lea.sflag [#allocation6], %s470
        %s472 = sand.u32 %s260, 1
        %s473 = smul.addr %s472, 32
        %s474 = scalar_lea.vmem [#allocation15], %s473
        %s475 = smul.u32 2, %s39
        %s476 = smul.u32 2, %s39
        %s477 = sld [smem:[#allocation3 + %s38]]
        %v478 = vld [vmem:[#allocation4] sm:$0xff]
        %v479 = vld [vmem:[#allocation4 + $0x8] sm:$0xff]
        %v480 = vld [vmem:[#allocation4 + $0x10] sm:$0xff]
        %v481 = vld [vmem:[#allocation4 + $0x18] sm:$0xff]
        %v482 = vld [vmem:[%s423] sm:$0xff]
        %v483 = vld [vmem:[%s423 + $0x8] sm:$0xff]
        %v484 = vld [vmem:[%s423 + $0x10] sm:$0xff]
        %v485 = vld [vmem:[%s423 + $0x18] sm:$0xff]
        %v486 = vld [vmem:[%s423 + $0x20] sm:$0xff]
        %v487 = vld [vmem:[%s423 + $0x28] sm:$0xff]
        %v488 = vld [vmem:[%s423 + $0x30] sm:$0xff]
        %v489 = vld [vmem:[%s423 + $0x38] sm:$0xff]
        %v490 = vld [vmem:[%s423 + $0x40] sm:$0xff]
        %v491 = vld [vmem:[%s423 + $0x48] sm:$0xff]
        %v492 = vld [vmem:[%s423 + $0x50] sm:$0xff]
        %v493 = vld [vmem:[%s423 + $0x58] sm:$0xff]
        %v494 = vld [vmem:[%s423 + $0x60] sm:$0xff]
        %v495 = vld [vmem:[%s423 + $0x68] sm:$0xff]
        %v496 = vld [vmem:[%s423 + $0x70] sm:$0xff]
        %v497 = vld [vmem:[%s423 + $0x78] sm:$0xff]
        %498 = vmatprep.subr.mxu0 0.0
        %499 = vmatpush1.msra.mxu0 %v482
        %500 = vmatprep.subr.mxu0 0.0
        %501 = vmatpush1.msra.mxu0 %v483
        %502 = vmatprep.subr.mxu0 0.0
        %503 = vmatpush1.msra.mxu0 %v484
        %504 = vmatprep.subr.mxu0 0.0
        %505 = vmatpush1.msra.mxu0 %v485
        %506 = vmatprep.subr.mxu0 0.0
        %507 = vmatpush1.msra.mxu0 %v486
        %508 = vmatprep.subr.mxu0 0.0
        %509 = vmatpush1.msra.mxu0 %v487
        %510 = vmatprep.subr.mxu0 0.0
        %511 = vmatpush1.msra.mxu0 %v488
        %512 = vmatprep.subr.mxu0 0.0
        %513 = vmatpush1.msra.mxu0 %v489
        %514 = vmatprep.subr.mxu0 0.0
        %515 = vmatpush1.msra.mxu0 %v490
        %516 = vmatprep.subr.mxu0 0.0
        %517 = vmatpush1.msra.mxu0 %v491
        %518 = vmatprep.subr.mxu0 0.0
        %519 = vmatpush1.msra.mxu0 %v492
        %520 = vmatprep.subr.mxu0 0.0
        %521 = vmatpush1.msra.mxu0 %v493
        %522 = vmatprep.subr.mxu0 0.0
        %523 = vmatpush1.msra.mxu0 %v494
        %524 = vmatprep.subr.mxu0 0.0
        %525 = vmatpush1.msra.mxu0 %v495
        %526 = vmatprep.subr.mxu0 0.0
        %527 = vmatpush1.msra.mxu0 %v496
        %528 = vmatprep.subr.mxu0 0.0
        %529 = vmatpush1.msra.mxu0 %v497
        %530 = vmatprep.subr.mxu0 0.0
        %531 = vmatpush1.msra.mxu0 0.0
        %532 = vmatprep.subr.mxu0 0.0
        %533 = vmatpush1.msra.mxu0 0.0
        %534 = vmatprep.subr.mxu0 0.0
        %535 = vmatpush1.msra.mxu0 0.0
        %536 = vmatprep.subr.mxu0 0.0
        %537 = vmatpush1.msra.mxu0 0.0
        %538 = vmatprep.subr.mxu0 0.0
        %539 = vmatpush1.msra.mxu0 0.0
        %540 = vmatprep.subr.mxu0 0.0
        %541 = vmatpush1.msra.mxu0 0.0
        %542 = vmatprep.subr.mxu0 0.0
        %543 = vmatpush1.msra.mxu0 0.0
        %544 = vmatprep.subr.mxu0 0.0
        %545 = vmatpush1.msra.mxu0 0.0
        %546 = vmatprep.subr.mxu0 0.0
        %547 = vmatpush1.msra.mxu0 0.0
        %548 = vmatprep.subr.mxu0 0.0
        %549 = vmatpush1.msra.mxu0 0.0
        %550 = vmatprep.subr.mxu0 0.0
        %551 = vmatpush1.msra.mxu0 0.0
        %552 = vmatprep.subr.mxu0 0.0
        %553 = vmatpush1.msra.mxu0 0.0
        %554 = vmatprep.subr.mxu0 0.0
        %555 = vmatpush1.msra.mxu0 0.0
        %556 = vmatprep.subr.mxu0 0.0
        %557 = vmatpush1.msra.mxu0 0.0
        %558 = vmatprep.subr.mxu0 0.0
        %559 = vmatpush1.msra.mxu0 0.0
        %560 = vmatprep.subr.mxu0 0.0
        %561 = vmatpush1.msra.mxu0 0.0
        %562 = vmatprep.mubr.f32.mxu0 0.0
        %563 = vmatmul.mubr.f32.gmra.mrb[0].mxu0 %v478
        %v564 = vpop.f32.mrb[0].mxu0
        %v565 = vadd.f32 0.0, %v564
        %v566 = vpop.f32.mrb[0].mxu0
        %567 = vmatprep.mubr.f32.mxu0 0.0
        %568 = vmatmul.mubr.f32.gmra.mrb[0].mxu0 %v479
        %v569 = vpop.f32.mrb[0].mxu0
        %v570 = vadd.f32 0.0, %v569
        %v571 = vpop.f32.mrb[0].mxu0
        %572 = vmatprep.mubr.f32.mxu0 0.0
        %573 = vmatmul.mubr.f32.gmra.mrb[0].mxu0 %v480
        %v574 = vpop.f32.mrb[0].mxu0
        %v575 = vadd.f32 0.0, %v574
        %v576 = vpop.f32.mrb[0].mxu0
        %577 = vmatprep.mubr.f32.mxu0 0.0
        %578 = vmatmul.mubr.f32.gmra.mrb[0].mxu0 %v481
        %v579 = vpop.f32.mrb[0].mxu0
        %v580 = vadd.f32 0.0, %v579
        %v581 = vpop.f32.mrb[0].mxu0
        %582 = vdwg.mxu0
        %vm583 = vcmp.ge.f32.partialorder %v565, 0.0
        %vm584 = vcmp.ge.f32.partialorder %v570, 0.0
        %vm585 = vcmp.ge.f32.partialorder %v575, 0.0
        %vm586 = vcmp.ge.f32.partialorder %v580, 0.0
        %v587 = vmul.f32 %v565, 0.1
        %v588 = vmul.f32 %v570, 0.1
        %v589 = vmul.f32 %v575, 0.1
        %v590 = vmul.f32 %v580, 0.1
        %v591 = vsel %vm583, %v565, %v587
        %v592 = vsel %vm584, %v570, %v588
        %v593 = vsel %vm585, %v575, %v589
        %v594 = vsel %vm586, %v580, %v590
        %v595 = vmul.f32 %v591, %v591
        %v596 = vmul.f32 %v592, %v592
        %v597 = vmul.f32 %v593, %v593
        %v598 = vmul.f32 %v594, %v594
        %v599 = vadd.f32 %v595, %v596
        %v600 = vrot.slane %v599, 4
        %v601 = vadd.f32 %v599, %v600
        %v602 = vrot.slane %v601, 2
        %v603 = vadd.f32 %v601, %v602
        %v604 = vrot.slane %v603, 1
        %v605 = vadd.f32 %v603, %v604
        %v606 = vadd.f32 %v597, %v598
        %v607 = vrot.slane %v606, 4
        %v608 = vadd.f32 %v606, %v607
        %v609 = vrot.slane %v608, 2
        %v610 = vadd.f32 %v608, %v609
        %v611 = vrot.slane %v610, 1
        %v612 = vadd.f32 %v610, %v611
        %v613 = vmax.f32 %v605, 1e-24
        %v614 = vmax.f32 %v612, 1e-24
        %v615 = vrsqrt.pop %v613
        %v616 = vrsqrt.pop %v614
        %v617 = vmul.f32 %v615, 4.0
        %v618 = vmul.f32 %v616, 4.0
        %v619 = vmul.f32 %v591, %v617
        %v620 = vmul.f32 %v592, %v617
        %v621 = vmul.f32 %v593, %v618
        %v622 = vmul.f32 %v594, %v618
        %v623 = vlaneseq
        %v624 = vand.u32 %v623, 127
        %v625 = vstv %s477
        %vm626 = vcmp.lt.s32.totalorder %v624, %v625
        %v627 = vsel %vm626, 1, 0
        %vm628 = vcmp.eq.s32.totalorder %v627, 1
        %v629 = vsel %vm628, %v619, -1e+30
        %v630 = vsel %vm628, %v620, -1e+30
        %v631 = vsel %vm628, %v621, -1e+30
        %v632 = vsel %vm628, %v622, -1e+30
        %633 = vmax.xlane.f32.xlu0 %v629
        %v634 = vpop.xlane.xlu0 %633
        %635 = vmax.xlane.f32.xlu0 %v630
        %v636 = vpop.xlane.xlu0 %635
        %637 = vmax.xlane.f32.xlu0 %v631
        %v638 = vpop.xlane.xlu0 %637
        %639 = vmax.xlane.f32.xlu0 %v632
        %v640 = vpop.xlane.xlu0 %639
        %v641 = vsub.f32 %v629, %v634
        %v642 = vsub.f32 %v630, %v636
        %v643 = vsub.f32 %v631, %v638
        %v644 = vsub.f32 %v632, %v640
        %v645 = vmul.f32 %v641, 1.442695
        %v646 = vpow.pop %v645
        %v647 = vmul.f32 %v642, 1.442695
        %v648 = vpow.pop %v647
        %v649 = vmul.f32 %v643, 1.442695
        %v650 = vpow.pop %v649
        %v651 = vmul.f32 %v644, 1.442695
        %v652 = vpow.pop %v651
        %653 = vadd.xlane.f32.xlu0 %v646
        %v654 = vpop.xlane.xlu0 %653
        %655 = vadd.xlane.f32.xlu0 %v648
        %v656 = vpop.xlane.xlu0 %655
        %657 = vadd.xlane.f32.xlu0 %v650
        %v658 = vpop.xlane.xlu0 %657
        %659 = vadd.xlane.f32.xlu0 %v652
        %v660 = vpop.xlane.xlu0 %659
        %v661 = vrcp.pop %v654
        %v662 = vrcp.pop %v656
        %v663 = vrcp.pop %v658
        %v664 = vrcp.pop %v660
        %v665 = vmul.f32 %v646, %v661
        %v666 = vmul.f32 %v648, %v662
        %v667 = vmul.f32 %v650, %v663
        %v668 = vmul.f32 %v652, %v664
        %v669 = vld [vmem:[%s414] sm:$0xff]
        %v670 = vld [vmem:[%s414 + $0x8] sm:$0xff]
        %v671 = vld [vmem:[%s414 + $0x10] sm:$0xff]
        %v672 = vld [vmem:[%s414 + $0x18] sm:$0xff]
        %v673 = vld [vmem:[%s414 + $0x20] sm:$0xff]
        %v674 = vld [vmem:[%s414 + $0x28] sm:$0xff]
        %v675 = vld [vmem:[%s414 + $0x30] sm:$0xff]
        %v676 = vld [vmem:[%s414 + $0x38] sm:$0xff]
        %v677 = vld [vmem:[%s414 + $0x40] sm:$0xff]
        %v678 = vld [vmem:[%s414 + $0x48] sm:$0xff]
        %v679 = vld [vmem:[%s414 + $0x50] sm:$0xff]
        %v680 = vld [vmem:[%s414 + $0x58] sm:$0xff]
        %v681 = vld [vmem:[%s414 + $0x60] sm:$0xff]
        %v682 = vld [vmem:[%s414 + $0x68] sm:$0xff]
        %v683 = vld [vmem:[%s414 + $0x70] sm:$0xff]
        %v684 = vld [vmem:[%s414 + $0x78] sm:$0xff]
        %685 = vmatprep.subr.mxu0 0.0
        %686 = vmatpush1.msra.mxu0 %v669
        %687 = vmatprep.subr.mxu0 0.0
        %688 = vmatpush1.msra.mxu0 %v670
        %689 = vmatprep.subr.mxu0 0.0
        %690 = vmatpush1.msra.mxu0 %v671
        %691 = vmatprep.subr.mxu0 0.0
        %692 = vmatpush1.msra.mxu0 %v672
        %693 = vmatprep.subr.mxu0 0.0
        %694 = vmatpush1.msra.mxu0 %v673
        %695 = vmatprep.subr.mxu0 0.0
        %696 = vmatpush1.msra.mxu0 %v674
        %697 = vmatprep.subr.mxu0 0.0
        %698 = vmatpush1.msra.mxu0 %v675
        %699 = vmatprep.subr.mxu0 0.0
        %700 = vmatpush1.msra.mxu0 %v676
        %701 = vmatprep.subr.mxu0 0.0
        %702 = vmatpush1.msra.mxu0 %v677
        %703 = vmatprep.subr.mxu0 0.0
        %704 = vmatpush1.msra.mxu0 %v678
        %705 = vmatprep.subr.mxu0 0.0
        %706 = vmatpush1.msra.mxu0 %v679
        %707 = vmatprep.subr.mxu0 0.0
        %708 = vmatpush1.msra.mxu0 %v680
        %709 = vmatprep.subr.mxu0 0.0
        %710 = vmatpush1.msra.mxu0 %v681
        %711 = vmatprep.subr.mxu0 0.0
        %712 = vmatpush1.msra.mxu0 %v682
        %713 = vmatprep.subr.mxu0 0.0
        %714 = vmatpush1.msra.mxu0 %v683
        %715 = vmatprep.subr.mxu0 0.0
        %716 = vmatpush1.msra.mxu0 %v684
        %717 = vmatprep.subr.mxu0 0.0
        %718 = vmatpush1.msra.mxu0 0.0
        %719 = vmatprep.subr.mxu0 0.0
        %720 = vmatpush1.msra.mxu0 0.0
        %721 = vmatprep.subr.mxu0 0.0
        %722 = vmatpush1.msra.mxu0 0.0
        %723 = vmatprep.subr.mxu0 0.0
        %724 = vmatpush1.msra.mxu0 0.0
        %725 = vmatprep.subr.mxu0 0.0
        %726 = vmatpush1.msra.mxu0 0.0
        %727 = vmatprep.subr.mxu0 0.0
        %728 = vmatpush1.msra.mxu0 0.0
        %729 = vmatprep.subr.mxu0 0.0
        %730 = vmatpush1.msra.mxu0 0.0
        %731 = vmatprep.subr.mxu0 0.0
        %732 = vmatpush1.msra.mxu0 0.0
        %733 = vmatprep.subr.mxu0 0.0
        %734 = vmatpush1.msra.mxu0 0.0
        %735 = vmatprep.subr.mxu0 0.0
        %736 = vmatpush1.msra.mxu0 0.0
        %737 = vmatprep.subr.mxu0 0.0
        %738 = vmatpush1.msra.mxu0 0.0
        %739 = vmatprep.subr.mxu0 0.0
        %740 = vmatpush1.msra.mxu0 0.0
        %741 = vmatprep.subr.mxu0 0.0
        %742 = vmatpush1.msra.mxu0 0.0
        %743 = vmatprep.subr.mxu0 0.0
        %744 = vmatpush1.msra.mxu0 0.0
        %745 = vmatprep.subr.mxu0 0.0
        %746 = vmatpush1.msra.mxu0 0.0
        %747 = vmatprep.subr.mxu0 0.0
        %748 = vmatpush1.msra.mxu0 0.0
        %749 = vmatprep.mubr.f32.mxu0 0.0
        %750 = vmatmul.mubr.f32.gmra.mrb[0].mxu0 %v665
        %v751 = vpop.f32.mrb[0].mxu0
        %v752 = vadd.f32 0.0, %v751
        %v753 = vpop.f32.mrb[0].mxu0
        %754 = vmatprep.mubr.f32.mxu0 0.0
        %755 = vmatmul.mubr.f32.gmra.mrb[0].mxu0 %v666
        %v756 = vpop.f32.mrb[0].mxu0
        %v757 = vadd.f32 0.0, %v756
        %v758 = vpop.f32.mrb[0].mxu0
        %759 = vmatprep.mubr.f32.mxu0 0.0
        %760 = vmatmul.mubr.f32.gmra.mrb[0].mxu0 %v667
        %v761 = vpop.f32.mrb[0].mxu0
        %v762 = vadd.f32 0.0, %v761
        %v763 = vpop.f32.mrb[0].mxu0
        %764 = vmatprep.mubr.f32.mxu0 0.0
        %765 = vmatmul.mubr.f32.gmra.mrb[0].mxu0 %v668
        %v766 = vpop.f32.mrb[0].mxu0
        %v767 = vadd.f32 0.0, %v766
        %v768 = vpop.f32.mrb[0].mxu0
        %769 = vdwg.mxu0
        %v770 = vld [vmem:[#allocation10] sm:$0xff]
        %v771 = vld [vmem:[#allocation10 + $0x8] sm:$0xff]
        %v772 = vld [vmem:[#allocation10 + $0x10] sm:$0xff]
        %v773 = vld [vmem:[#allocation10 + $0x18] sm:$0xff]
        %v774 = vld [vmem:[#allocation10 + $0x20] sm:$0xff]
        %v775 = vld [vmem:[#allocation10 + $0x28] sm:$0xff]
        %v776 = vld [vmem:[#allocation10 + $0x30] sm:$0xff]
        %v777 = vld [vmem:[#allocation10 + $0x38] sm:$0xff]
        %v778 = vld [vmem:[#allocation10 + $0x40] sm:$0xff]
        %v779 = vld [vmem:[#allocation10 + $0x48] sm:$0xff]
        %v780 = vld [vmem:[#allocation10 + $0x50] sm:$0xff]
        %v781 = vld [vmem:[#allocation10 + $0x58] sm:$0xff]
        %v782 = vld [vmem:[#allocation10 + $0x60] sm:$0xff]
        %v783 = vld [vmem:[#allocation10 + $0x68] sm:$0xff]
        %v784 = vld [vmem:[#allocation10 + $0x70] sm:$0xff]
        %v785 = vld [vmem:[#allocation10 + $0x78] sm:$0xff]
        %v786 = vld [vmem:[#allocation10 + $0x80] sm:$0xff]
        %v787 = vld [vmem:[#allocation10 + $0x88] sm:$0xff]
        %v788 = vld [vmem:[#allocation10 + $0x90] sm:$0xff]
        %v789 = vld [vmem:[#allocation10 + $0x98] sm:$0xff]
        %v790 = vld [vmem:[#allocation10 + $0xa0] sm:$0xff]
        %v791 = vld [vmem:[#allocation10 + $0xa8] sm:$0xff]
        %v792 = vld [vmem:[#allocation10 + $0xb0] sm:$0xff]
        %v793 = vld [vmem:[#allocation10 + $0xb8] sm:$0xff]
        %v794 = vld [vmem:[#allocation10 + $0xc0] sm:$0xff]
        %v795 = vld [vmem:[#allocation10 + $0xc8] sm:$0xff]
        %v796 = vld [vmem:[#allocation10 + $0xd0] sm:$0xff]
        %v797 = vld [vmem:[#allocation10 + $0xd8] sm:$0xff]
        %v798 = vld [vmem:[#allocation10 + $0xe0] sm:$0xff]
        %v799 = vld [vmem:[#allocation10 + $0xe8] sm:$0xff]
        %v800 = vld [vmem:[#allocation10 + $0xf0] sm:$0xff]
        %v801 = vld [vmem:[#allocation10 + $0xf8] sm:$0xff]
        %v802 = vld [vmem:[%s5] sm:$0x3]
        %v804 = vlaneseq
        %v805 = vshrl.u32 %v804, 7
        %v806 = vsub.s32 0, %v805
        %v807 = vrot.slane %v802, %v806
        %v808 = vlaneseq
        %v809 = vshrl.u32 %v808, 7
        %v810 = vsub.s32 1, %v809
        %v811 = vrot.slane %v802, %v810
        %814 = vmatprep.subr.mxu0 %v771
        %815 = vmatpush1.msra.mxu0 %v770
        %816 = vmatprep.subr.mxu0 %v773
        %817 = vmatpush1.msra.mxu0 %v772
        %818 = vmatprep.subr.mxu0 %v775
        %819 = vmatpush1.msra.mxu0 %v774
        %820 = vmatprep.subr.mxu0 %v777
        %821 = vmatpush1.msra.mxu0 %v776
        %822 = vmatprep.subr.mxu0 %v779
        %823 = vmatpush1.msra.mxu0 %v778
        %824 = vmatprep.subr.mxu0 %v781
        %825 = vmatpush1.msra.mxu0 %v780
        %826 = vmatprep.subr.mxu0 %v783
        %827 = vmatpush1.msra.mxu0 %v782
        %828 = vmatprep.subr.mxu0 %v785
        %829 = vmatpush1.msra.mxu0 %v784
        %830 = vmatprep.subr.mxu0 %v787
        %831 = vmatpush1.msra.mxu0 %v786
        %832 = vmatprep.subr.mxu0 %v789
        %833 = vmatpush1.msra.mxu0 %v788
        %834 = vmatprep.subr.mxu0 %v791
        %835 = vmatpush1.msra.mxu0 %v790
        %836 = vmatprep.subr.mxu0 %v793
        %837 = vmatpush1.msra.mxu0 %v792
        %838 = vmatprep.subr.mxu0 %v795
        %839 = vmatpush1.msra.mxu0 %v794
        %840 = vmatprep.subr.mxu0 %v797
        %841 = vmatpush1.msra.mxu0 %v796
        %842 = vmatprep.subr.mxu0 %v799
        %843 = vmatpush1.msra.mxu0 %v798
        %844 = vmatprep.subr.mxu0 %v801
        %845 = vmatpush1.msra.mxu0 %v800
        %846 = vmatprep.subr.mxu0 0.0
        %847 = vmatpush1.msra.mxu0 0.0
        %848 = vmatprep.subr.mxu0 0.0
        %849 = vmatpush1.msra.mxu0 0.0
        %850 = vmatprep.subr.mxu0 0.0
        %851 = vmatpush1.msra.mxu0 0.0
        %852 = vmatprep.subr.mxu0 0.0
        %853 = vmatpush1.msra.mxu0 0.0
        %854 = vmatprep.subr.mxu0 0.0
        %855 = vmatpush1.msra.mxu0 0.0
        %856 = vmatprep.subr.mxu0 0.0
        %857 = vmatpush1.msra.mxu0 0.0
        %858 = vmatprep.subr.mxu0 0.0
        %859 = vmatpush1.msra.mxu0 0.0
        %860 = vmatprep.subr.mxu0 0.0
        %861 = vmatpush1.msra.mxu0 0.0
        %862 = vmatprep.subr.mxu0 0.0
        %863 = vmatpush1.msra.mxu0 0.0
        %864 = vmatprep.subr.mxu0 0.0
        %865 = vmatpush1.msra.mxu0 0.0
        %866 = vmatprep.subr.mxu0 0.0
        %867 = vmatpush1.msra.mxu0 0.0
        %868 = vmatprep.subr.mxu0 0.0
        %869 = vmatpush1.msra.mxu0 0.0
        %870 = vmatprep.subr.mxu0 0.0
        %871 = vmatpush1.msra.mxu0 0.0
        %872 = vmatprep.subr.mxu0 0.0
        %873 = vmatpush1.msra.mxu0 0.0
        %874 = vmatprep.subr.mxu0 0.0
        %875 = vmatpush1.msra.mxu0 0.0
        %876 = vmatprep.subr.mxu0 0.0
        %877 = vmatpush1.msra.mxu0 0.0
        %878 = vmatprep.mubr.f32.mxu0 0.0
        %879 = vmatmul.mubr.f32.gmra.mrb[0].mxu0 %v752
        %v880 = vpop.f32.mrb[0].mxu0
        %v881 = vadd.f32 %v807, %v880
        %v882 = vpop.f32.mrb[0].mxu0
        %v883 = vadd.f32 %v811, %v882
        %884 = vmatprep.mubr.f32.mxu0 0.0
        %885 = vmatmul.mubr.f32.gmra.mrb[0].mxu0 %v757
        %v886 = vpop.f32.mrb[0].mxu0
        %v887 = vadd.f32 %v807, %v886
        %v888 = vpop.f32.mrb[0].mxu0
        %v889 = vadd.f32 %v811, %v888
        %890 = vmatprep.mubr.f32.mxu0 0.0
        %891 = vmatmul.mubr.f32.gmra.mrb[0].mxu0 %v762
        %v892 = vpop.f32.mrb[0].mxu0
        %v893 = vadd.f32 %v807, %v892
        %v894 = vpop.f32.mrb[0].mxu0
        %v895 = vadd.f32 %v811, %v894
        %896 = vmatprep.mubr.f32.mxu0 0.0
        %897 = vmatmul.mubr.f32.gmra.mrb[0].mxu0 %v767
        %v898 = vpop.f32.mrb[0].mxu0
        %v899 = vadd.f32 %v807, %v898
        %v900 = vpop.f32.mrb[0].mxu0
        %v901 = vadd.f32 %v811, %v900
        %902 = vdwg.mxu0
        %v903 = vtanh.pop %v881
        %v904 = vtanh.pop %v887
        %v905 = vtanh.pop %v893
        %v906 = vtanh.pop %v899
        %v907 = vmul.f32 %v478, %v903
        %v908 = vmul.f32 %v479, %v904
        %v909 = vmul.f32 %v480, %v905
        %v910 = vmul.f32 %v481, %v906
        %v911 = vadd.f32 %v907, %v883
        %v912 = vadd.f32 %v908, %v889
        %v913 = vadd.f32 %v909, %v895
        %v914 = vadd.f32 %v910, %v901
        %v915 = vld [vmem:[#allocation12] sm:$0xff]
        %v916 = vld [vmem:[#allocation12 + $0x8] sm:$0xff]
        %v917 = vld [vmem:[#allocation12 + $0x10] sm:$0xff]
        %v918 = vld [vmem:[#allocation12 + $0x18] sm:$0xff]
        %v919 = vld [vmem:[#allocation12 + $0x20] sm:$0xff]
        %v920 = vld [vmem:[#allocation12 + $0x28] sm:$0xff]
        %v921 = vld [vmem:[#allocation12 + $0x30] sm:$0xff]
        %v922 = vld [vmem:[#allocation12 + $0x38] sm:$0xff]
        %v923 = vld [vmem:[#allocation12 + $0x40] sm:$0xff]
        %v924 = vld [vmem:[#allocation12 + $0x48] sm:$0xff]
        %v925 = vld [vmem:[#allocation12 + $0x50] sm:$0xff]
        %v926 = vld [vmem:[#allocation12 + $0x58] sm:$0xff]
        %v927 = vld [vmem:[#allocation12 + $0x60] sm:$0xff]
        %v928 = vld [vmem:[#allocation12 + $0x68] sm:$0xff]
        %v929 = vld [vmem:[#allocation12 + $0x70] sm:$0xff]
        %v930 = vld [vmem:[#allocation12 + $0x78] sm:$0xff]
        %v931 = vld [vmem:[%s7] sm:$0x1]
        %v933 = vlaneseq
        %v934 = vshrl.u32 %v933, 7
        %v935 = vsub.s32 0, %v934
        %v936 = vrot.slane %v931, %v935
        %938 = vmatprep.subr.mxu0 0.0
        %939 = vmatpush1.msra.mxu0 %v915
        %940 = vmatprep.subr.mxu0 0.0
        %941 = vmatpush1.msra.mxu0 %v916
        %942 = vmatprep.subr.mxu0 0.0
        %943 = vmatpush1.msra.mxu0 %v917
        %944 = vmatprep.subr.mxu0 0.0
        %945 = vmatpush1.msra.mxu0 %v918
        %946 = vmatprep.subr.mxu0 0.0
        %947 = vmatpush1.msra.mxu0 %v919
        %948 = vmatprep.subr.mxu0 0.0
        %949 = vmatpush1.msra.mxu0 %v920
        %950 = vmatprep.subr.mxu0 0.0
        %951 = vmatpush1.msra.mxu0 %v921
        %952 = vmatprep.subr.mxu0 0.0
        %953 = vmatpush1.msra.mxu0 %v922
        %954 = vmatprep.subr.mxu0 0.0
        %955 = vmatpush1.msra.mxu0 %v923
        %956 = vmatprep.subr.mxu0 0.0
        %957 = vmatpush1.msra.mxu0 %v924
        %958 = vmatprep.subr.mxu0 0.0
        %959 = vmatpush1.msra.mxu0 %v925
        %960 = vmatprep.subr.mxu0 0.0
        %961 = vmatpush1.msra.mxu0 %v926
        %962 = vmatprep.subr.mxu0 0.0
        %963 = vmatpush1.msra.mxu0 %v927
        %964 = vmatprep.subr.mxu0 0.0
        %965 = vmatpush1.msra.mxu0 %v928
        %966 = vmatprep.subr.mxu0 0.0
        %967 = vmatpush1.msra.mxu0 %v929
        %968 = vmatprep.subr.mxu0 0.0
        %969 = vmatpush1.msra.mxu0 %v930
        %970 = vmatprep.subr.mxu0 0.0
        %971 = vmatpush1.msra.mxu0 0.0
        %972 = vmatprep.subr.mxu0 0.0
        %973 = vmatpush1.msra.mxu0 0.0
        %974 = vmatprep.subr.mxu0 0.0
        %975 = vmatpush1.msra.mxu0 0.0
        %976 = vmatprep.subr.mxu0 0.0
        %977 = vmatpush1.msra.mxu0 0.0
        %978 = vmatprep.subr.mxu0 0.0
        %979 = vmatpush1.msra.mxu0 0.0
        %980 = vmatprep.subr.mxu0 0.0
        %981 = vmatpush1.msra.mxu0 0.0
        %982 = vmatprep.subr.mxu0 0.0
        %983 = vmatpush1.msra.mxu0 0.0
        %984 = vmatprep.subr.mxu0 0.0
        %985 = vmatpush1.msra.mxu0 0.0
        %986 = vmatprep.subr.mxu0 0.0
        %987 = vmatpush1.msra.mxu0 0.0
        %988 = vmatprep.subr.mxu0 0.0
        %989 = vmatpush1.msra.mxu0 0.0
        %990 = vmatprep.subr.mxu0 0.0
        %991 = vmatpush1.msra.mxu0 0.0
        %992 = vmatprep.subr.mxu0 0.0
        %993 = vmatpush1.msra.mxu0 0.0
        %994 = vmatprep.subr.mxu0 0.0
        %995 = vmatpush1.msra.mxu0 0.0
        %996 = vmatprep.subr.mxu0 0.0
        %997 = vmatpush1.msra.mxu0 0.0
        %998 = vmatprep.subr.mxu0 0.0
        %999 = vmatpush1.msra.mxu0 0.0
        %1000 = vmatprep.subr.mxu0 0.0
        %1001 = vmatpush1.msra.mxu0 0.0
        %1002 = vmatprep.mubr.f32.mxu0 0.0
        %1003 = vmatmul.mubr.f32.gmra.mrb[0].mxu0 %v911
        %v1004 = vpop.f32.mrb[0].mxu0
        %v1005 = vadd.f32 %v936, %v1004
        %v1006 = vpop.f32.mrb[0].mxu0
        %1007 = vmatprep.mubr.f32.mxu0 0.0
        %1008 = vmatmul.mubr.f32.gmra.mrb[0].mxu0 %v912
        %v1009 = vpop.f32.mrb[0].mxu0
        %v1010 = vadd.f32 %v936, %v1009
        %v1011 = vpop.f32.mrb[0].mxu0
        %1012 = vmatprep.mubr.f32.mxu0 0.0
        %1013 = vmatmul.mubr.f32.gmra.mrb[0].mxu0 %v913
        %v1014 = vpop.f32.mrb[0].mxu0
        %v1015 = vadd.f32 %v936, %v1014
        %v1016 = vpop.f32.mrb[0].mxu0
        %1017 = vmatprep.mubr.f32.mxu0 0.0
        %1018 = vmatmul.mubr.f32.gmra.mrb[0].mxu0 %v914
        %v1019 = vpop.f32.mrb[0].mxu0
        %v1020 = vadd.f32 %v936, %v1019
        %v1021 = vpop.f32.mrb[0].mxu0
        %1022 = vdwg.mxu0
        %v1023 = vmax.f32 %v1005, 0.0
        %v1024 = vmax.f32 %v1010, 0.0
        %v1025 = vmax.f32 %v1015, 0.0
        %v1026 = vmax.f32 %v1020, 0.0
        %v1027 = vld [vmem:[#allocation13] sm:$0xff]
        %v1028 = vld [vmem:[#allocation13 + $0x8] sm:$0xff]
        %v1029 = vld [vmem:[#allocation13 + $0x10] sm:$0xff]
        %v1030 = vld [vmem:[#allocation13 + $0x18] sm:$0xff]
        %v1031 = vld [vmem:[#allocation13 + $0x20] sm:$0xff]
        %v1032 = vld [vmem:[#allocation13 + $0x28] sm:$0xff]
        %v1033 = vld [vmem:[#allocation13 + $0x30] sm:$0xff]
        %v1034 = vld [vmem:[#allocation13 + $0x38] sm:$0xff]
        %v1035 = vld [vmem:[#allocation13 + $0x40] sm:$0xff]
        %v1036 = vld [vmem:[#allocation13 + $0x48] sm:$0xff]
        %v1037 = vld [vmem:[#allocation13 + $0x50] sm:$0xff]
        %v1038 = vld [vmem:[#allocation13 + $0x58] sm:$0xff]
        %v1039 = vld [vmem:[#allocation13 + $0x60] sm:$0xff]
        %v1040 = vld [vmem:[#allocation13 + $0x68] sm:$0xff]
        %v1041 = vld [vmem:[#allocation13 + $0x70] sm:$0xff]
        %v1042 = vld [vmem:[#allocation13 + $0x78] sm:$0xff]
        %v1043 = vld [vmem:[%s9] sm:$0x1]
        %v1045 = vlaneseq
        %v1046 = vshrl.u32 %v1045, 7
        %v1047 = vsub.s32 0, %v1046
        %v1048 = vrot.slane %v1043, %v1047
        %1050 = vmatprep.subr.mxu0 0.0
        %1051 = vmatpush1.msra.mxu0 %v1027
        %1052 = vmatprep.subr.mxu0 0.0
        %1053 = vmatpush1.msra.mxu0 %v1028
        %1054 = vmatprep.subr.mxu0 0.0
        %1055 = vmatpush1.msra.mxu0 %v1029
        %1056 = vmatprep.subr.mxu0 0.0
        %1057 = vmatpush1.msra.mxu0 %v1030
        %1058 = vmatprep.subr.mxu0 0.0
        %1059 = vmatpush1.msra.mxu0 %v1031
        %1060 = vmatprep.subr.mxu0 0.0
        %1061 = vmatpush1.msra.mxu0 %v1032
        %1062 = vmatprep.subr.mxu0 0.0
        %1063 = vmatpush1.msra.mxu0 %v1033
        %1064 = vmatprep.subr.mxu0 0.0
        %1065 = vmatpush1.msra.mxu0 %v1034
        %1066 = vmatprep.subr.mxu0 0.0
        %1067 = vmatpush1.msra.mxu0 %v1035
        %1068 = vmatprep.subr.mxu0 0.0
        %1069 = vmatpush1.msra.mxu0 %v1036
        %1070 = vmatprep.subr.mxu0 0.0
        %1071 = vmatpush1.msra.mxu0 %v1037
        %1072 = vmatprep.subr.mxu0 0.0
        %1073 = vmatpush1.msra.mxu0 %v1038
        %1074 = vmatprep.subr.mxu0 0.0
        %1075 = vmatpush1.msra.mxu0 %v1039
        %1076 = vmatprep.subr.mxu0 0.0
        %1077 = vmatpush1.msra.mxu0 %v1040
        %1078 = vmatprep.subr.mxu0 0.0
        %1079 = vmatpush1.msra.mxu0 %v1041
        %1080 = vmatprep.subr.mxu0 0.0
        %1081 = vmatpush1.msra.mxu0 %v1042
        %1082 = vmatprep.subr.mxu0 0.0
        %1083 = vmatpush1.msra.mxu0 0.0
        %1084 = vmatprep.subr.mxu0 0.0
        %1085 = vmatpush1.msra.mxu0 0.0
        %1086 = vmatprep.subr.mxu0 0.0
        %1087 = vmatpush1.msra.mxu0 0.0
        %1088 = vmatprep.subr.mxu0 0.0
        %1089 = vmatpush1.msra.mxu0 0.0
        %1090 = vmatprep.subr.mxu0 0.0
        %1091 = vmatpush1.msra.mxu0 0.0
        %1092 = vmatprep.subr.mxu0 0.0
        %1093 = vmatpush1.msra.mxu0 0.0
        %1094 = vmatprep.subr.mxu0 0.0
        %1095 = vmatpush1.msra.mxu0 0.0
        %1096 = vmatprep.subr.mxu0 0.0
        %1097 = vmatpush1.msra.mxu0 0.0
        %1098 = vmatprep.subr.mxu0 0.0
        %1099 = vmatpush1.msra.mxu0 0.0
        %1100 = vmatprep.subr.mxu0 0.0
        %1101 = vmatpush1.msra.mxu0 0.0
        %1102 = vmatprep.subr.mxu0 0.0
        %1103 = vmatpush1.msra.mxu0 0.0
        %1104 = vmatprep.subr.mxu0 0.0
        %1105 = vmatpush1.msra.mxu0 0.0
        %1106 = vmatprep.subr.mxu0 0.0
        %1107 = vmatpush1.msra.mxu0 0.0
        %1108 = vmatprep.subr.mxu0 0.0
        %1109 = vmatpush1.msra.mxu0 0.0
        %1110 = vmatprep.subr.mxu0 0.0
        %1111 = vmatpush1.msra.mxu0 0.0
        %1112 = vmatprep.subr.mxu0 0.0
        %1113 = vmatpush1.msra.mxu0 0.0
        %1114 = vmatprep.mubr.f32.mxu0 0.0
        %1115 = vmatmul.mubr.f32.gmra.mrb[0].mxu0 %v1023
        %v1116 = vpop.f32.mrb[0].mxu0
        %v1117 = vadd.f32 %v1048, %v1116
        %v1118 = vpop.f32.mrb[0].mxu0
        %1119 = vmatprep.mubr.f32.mxu0 0.0
        %1120 = vmatmul.mubr.f32.gmra.mrb[0].mxu0 %v1024
        %v1121 = vpop.f32.mrb[0].mxu0
        %v1122 = vadd.f32 %v1048, %v1121
        %v1123 = vpop.f32.mrb[0].mxu0
        %1124 = vmatprep.mubr.f32.mxu0 0.0
        %1125 = vmatmul.mubr.f32.gmra.mrb[0].mxu0 %v1025
        %v1126 = vpop.f32.mrb[0].mxu0
        %v1127 = vadd.f32 %v1048, %v1126
        %v1128 = vpop.f32.mrb[0].mxu0
        %1129 = vmatprep.mubr.f32.mxu0 0.0
        %1130 = vmatmul.mubr.f32.gmra.mrb[0].mxu0 %v1026
        %v1131 = vpop.f32.mrb[0].mxu0
        %v1132 = vadd.f32 %v1048, %v1131
        %v1133 = vpop.f32.mrb[0].mxu0
        %1134 = vdwg.mxu0
        %v1135 = vadd.f32 %v1117, %v478
        %v1136 = vadd.f32 %v1122, %v479
        %v1137 = vadd.f32 %v1127, %v480
        %v1138 = vadd.f32 %v1132, %v481
        %1139 = vst [vmem:[%s474] sm:$0xff] %v1135
        %1140 = vst [vmem:[%s474 + $0x8] sm:$0xff] %v1136
        %1141 = vst [vmem:[%s474 + $0x10] sm:$0xff] %v1137
        %1142 = vst [vmem:[%s474 + $0x18] sm:$0xff] %v1138
        %s1143 = sand.u32 %s260, 1
        %s1144 = scalar_lea.sflag [#allocation6], %s1143
        %s1145 = sand.u32 %s260, 1
        %s1146 = smul.addr %s1145, 32
        %s1147 = scalar_lea.vmem [#allocation15], %s1146
        // Predicated region
        $region81: #{tpu_custom_call.1} parent=55 // pred_check
          %p1148 = pneg %p270
        $region82: #{tpu_custom_call.1} parent=55 // pred_check_branch
          %1150 = sbr.rel (%p1148) target = $region84
        $region83: #{tpu_custom_call.1} parent=55 // pred_region
          #allocation17 [shape = 'u32[6]{0}', space=smem, size = 0x18, scoped, tag = 'DMA stride descriptor']
          %s1151 = smul.u32 2, %s39
          %s1153 = ssub.s32 512, 512
          %1154 = vsyncadd %s1144, %s1153
          %s1155 = smul.addr %s38, 2
          %s1156 = smul.addr %s1151, 6
          %s1157 = sadd.s32 %s1155, %s1156
          %s1158 = smul.addr %s1157, 128
          %s1159 = scalar_lea.hbm %s10, %s1158
          %s1161 = sshll.u32 1, 14
          %s1162 = sxor.u32 4294967295, %s1161
          %s1165 = sshll.u32 7, 18
          %s1166 = sxor.u32 4294967295, %s1165
          %s1167 = sand.u32 0, %s1166
          %s1169 = sor.u32 %s1167, 0
          %s1171 = sshll.u32 3, 24
          %s1172 = sxor.u32 4294967295, %s1171
          %s1173 = sand.u32 %s1169, %s1172
          %s1175 = sor.u32 %s1173, 0
          %s1176 = sshll.u32 %s1147, 4
          %s1177 = int_to_ptr.vmem [resolvable:$true] %s1176
          %1183 = sst [smem:[#allocation17]] 256
          %s1184 = scalar_lea.smem [#allocation17], 1
          %1185 = sst [smem:[%s1184]] 768
          %s1186 = scalar_lea.smem [#allocation17], 2
          %1187 = sst [smem:[%s1186]] 2
          %s1188 = scalar_lea.smem [#allocation17], 3
          %1189 = sst [smem:[%s1188]] 128
          %s1190 = scalar_lea.smem [#allocation17], 4
          %1191 = sst [smem:[%s1190]] 128
          %s1192 = scalar_lea.smem [#allocation17], 5
          %1193 = sst [smem:[%s1192]] 8
          %1195 = dma.general %s1177, 512, %s1159, %s1144, [#allocation16], [#allocation17], %s1175, 0
        $region84: #{tpu_custom_call.1} parent=55 // pred_fallthru
          _
      $region56: #{tpu_custom_call.1} parent=5 // pred_fallthru
        _
      %p1196 = scmp.le.s32.totalorder 2, %s29
      // Predicated region
      $region85: #{tpu_custom_call.1} parent=5 // pred_check
        %p1197 = pneg %p1196
      $region86: #{tpu_custom_call.1} parent=5 // pred_check_branch
        %1199 = sbr.rel (%p1197) target = $region88
      $region87: #{tpu_custom_call.1} parent=5 // pred_region
        %s1200 = ssub.s32 %s29, 2
        // Predicated region
        $region89: #{tpu_custom_call.1} parent=87 // pred_check
          %p1201 = pneg %p276
        $region90: #{tpu_custom_call.1} parent=87 // pred_check_branch
          %1203 = sbr.rel (%p1201) target = $region92
        $region91: #{tpu_custom_call.1} parent=87 // pred_region
          %s1204 = sand.u32 %s261, 1
          %s1205 = scalar_lea.sflag [#allocation6], %s1204
          %s1206 = sand.u32 %s261, 1
          %s1207 = smul.addr %s1206, 32
          %s1208 = scalar_lea.vmem [#allocation15], %s1207
          %1209 = dma.done %s1205, 512
        $region92: #{tpu_custom_call.1} parent=87 // pred_fallthru
          _
      $region88: #{tpu_custom_call.1} parent=5 // pred_fallthru
        _
    $region6: #{tpu_custom_call.1} parent=1 // loop_footer
      %s33 = sadd.s32 1, %s29
    $region7: #{tpu_custom_call.1} parent=1 // loop_footer_branch
      %28 = sbr.rel target = $region3
    $region8: #{tpu_custom_call.1} parent=1 // loop_exit
      _
    %1210 = vsyncpa [#allocation5], 1
    %s1211 = scalar_lea.sflag [#allocation5], 1
    %1212 = vsyncpa %s1211, 1
    %1213 = vsyncpa [#allocation8], 1
    %s1214 = scalar_lea.sflag [#allocation8], 1
    %1215 = vsyncpa %s1214, 1
    %1216 = vsyncpa [#allocation11], 1
    %1217 = vsyncpa [#allocation14], 1
    %1218 = vsyncpa [#allocation6], 1
    %s1219 = scalar_lea.sflag [#allocation6], 1
    %1220 = vsyncpa %s1219, 1

</llo_original>
